<compile_context>
chip_gen: v6e
topology: v6e:2x2x1
jax: 0.10.0
libtpu: 0.0.40
codegen_flags: <defaults>
</compile_context>

<pallas_src>
import functools

import numpy as np
import jax
import jax.numpy as jnp
from jax.experimental import pallas as pl
from jax.experimental.pallas import tpu as pltpu

# ----------------------------- config ---------------------------------------
FEATURE_VECTOR_SIZE = 16
D_IN = 3
D_OUT = 1
HIDDEN = [64, 64, 64, 64]          # `dims` argument of the module
SKIP_IN = (2,)                     # skip connection into layer 2
GEOM_BIAS = 1.0
MULTIRES = 0                       # no embedder -> dims[0] == d_in

DIMS = [D_IN] + HIDDEN + [D_OUT + FEATURE_VECTOR_SIZE]   # [3,64,64,64,64,17]
NUM_LAYERS = len(DIMS)                                   # 6 -> 5 linear layers
OUT_DIM = D_OUT + FEATURE_VECTOR_SIZE                    # 17
OUT_PAD = 8 * ((OUT_DIM + 7) // 8)                       # 24: aligned writeback
H0 = DIMS[1]                                             # 64
H_SKIP = DIMS[2] - DIMS[0]                               # 61 skip-layer h width

SOFTPLUS_BETA = 100.0
INV_SOFTPLUS_BETA = 1.0 / SOFTPLUS_BETA
SOFTPLUS_THRESHOLD = 20.0          # PyTorch nn.Softplus default threshold
INV_SQRT2 = float(1.0 / np.sqrt(2.0))

MAX_TILE_N = 8192                  # ~10 MiB live VMEM; fits v7x's 64 MiB too
TARGET_GRID_STEPS = 4              # keep >= 2 tiles per v7x TensorCore

assert NUM_LAYERS == 6 and SKIP_IN == (2,), "kernel below is written for this config"


# ----------------------------- shared math -----------------------------------
def _softplus100(x):
    # nn.Softplus(beta=100, threshold=20).  Stable in both f32 and bf16: both
    # branches of the where stay finite (exp(-|z|) <= 1, never inf).  The
    # divide by beta is replaced by a multiply with a precomputed constant;
    # log(1 + t) is accurate enough here since t >= exp(-20) on the selected
    # branch (below threshold) and the term is negligible otherwise.
    z = x * SOFTPLUS_BETA
    sp = jnp.maximum(x, 0.0) + jnp.log(1.0 + jnp.exp(-jnp.abs(z))) * INV_SOFTPLUS_BETA
    return jnp.where(z > SOFTPLUS_THRESHOLD, x, sp)


# ----------------------------- kernel ---------------------------------------
def implicit_net_kernel(x_ref,
                        w03_ref, w1_ref, w2a_ref, w3_ref, w4_ref,
                        b0_ref, b1_ref, b2_ref, b3_ref, b4_ref,
                        o_ref, *, mxu_dtype, act_dtype):
    md = mxu_dtype
    x = x_ref[...].astype(md)                                   # (3, tn)

    def lin(w_ref, h):
        # MXU matmul: operands in `md` (bf16 fast path), f32 accumulation.
        return jnp.dot(w_ref[...], h.astype(md),
                       preferred_element_type=jnp.float32)

    def act(pre):
        # Elementwise/softplus dtype is decoupled from the MXU dtype: bf16 on
        # v6e/v7x (bf16-native VPU/EUP), f32 on v5e and older.
        return _softplus100(pre.astype(act_dtype))

    # Merged K=3 pass: one MXU pass instead of two (pass cost is independent
    # of K).  Rows 0:64 -> layer-0 pre-activation; rows 64:128 -> the skip
    # layer's x-contribution with 1/sqrt(2) already folded into the weights.
    xz = lin(w03_ref, x)                                        # (128, tn) f32
    h = act(xz[:H0] + b0_ref[...])                              # (64, tn)
    h = act(lin(w1_ref, h) + b1_ref[...])                       # (64, tn); rows 61:64 inert
    h = act(lin(w2a_ref, h) + xz[H0:] + b2_ref[...])            # (64, tn) skip layer
    h = act(lin(w3_ref, h) + b3_ref[...])                       # (64, tn)
    # Last layer: no activation.  Rows 17:24 of the output are zero padding.
    o_ref[...] = lin(w4_ref, h) + b4_ref[...]                   # (24, tn) f32


# ----------------------------- wrapper ---------------------------------------
def _pick_tile_n(n):
    # Lane-aligned tile (multiple of 128): padding is bounded by < 1 tile
    # (the old next_power_of_2(cdiv(N,2)) could pad N by ~2x).  Aim for
    # TARGET_GRID_STEPS grid steps so both v7x TensorCores get work and the
    # x/out DMAs overlap compute; cap at MAX_TILE_N so live VMEM stays ~10 MiB
    # (inside the 32 MiB scoped default and v7x's 64 MiB physical VMEM).
    tile = 128 * pl.cdiv(n, 128 * TARGET_GRID_STEPS)
    return int(max(128, min(MAX_TILE_N, tile)))


def default_act_dtype():
    # bf16 activations only where the VPU/EUP are bf16-native (v6e, v7x);
    # v5e and older keep the f32 elementwise path.
    try:
        kind = jax.devices()[0].device_kind.lower()
    except Exception:
        return jnp.float32
    if any(v in kind for v in ("v2", "v3", "v4", "v5")):
        return jnp.float32
    return jnp.bfloat16


def implicit_network_forward(x, params, *, tile_n=None,
                             mxu_dtype=jnp.bfloat16, act_dtype=None,
                             channels_first_output=False):
    """x: (N, D_IN) float32.

    Returns (N, OUT_DIM) float32 (module layout) by default; pass
    channels_first_output=True to get the (OUT_DIM, N) slab and skip the
    host-side output transpose (preferred fast path when the consumer allows).
    """
    kweights, kbiases = params
    N = x.shape[0]
    if act_dtype is None:
        act_dtype = default_act_dtype()
    if tile_n is None:
        tile_n = _pick_tile_n(N)

    n_tiles = pl.cdiv(N, tile_n)
    N_pad = n_tiles * tile_n

    # Channels-first: N sits on the 128-lane axis -> lane-dense loads/stores
    # and a >= 128-wide matmul free dimension for every layer.
    x_t = x.T.astype(jnp.float32)                               # (D_IN, N)
    if N_pad != N:
        x_t = jnp.pad(x_t, ((0, 0), (0, N_pad - N)))            # zero pad is act-safe

    kweights = tuple(w.astype(mxu_dtype) for w in kweights)
    kbiases = tuple(b.astype(jnp.float32) for b in kbiases)

    def const_spec(arr):
        # Whole array, constant block index: fetched once, never re-DMA'd per
        # grid step.  (pl.Buffered(1) would drop the unused second pipeline
        # buffer; left at default for portability — the VMEM saving is small.)
        return pl.BlockSpec(arr.shape, lambda i: (0, 0))

    grid_spec = pltpu.PrefetchScalarGridSpec(
        num_scalar_prefetch=0,
        grid=(n_tiles,),
        in_specs=[pl.BlockSpec((D_IN, tile_n), lambda i: (0, i))]
                 + [const_spec(w) for w in kweights]
                 + [const_spec(b) for b in kbiases],
        out_specs=pl.BlockSpec((OUT_PAD, tile_n), lambda i: (0, i)),
    )

    kernel = functools.partial(implicit_net_kernel,
                               mxu_dtype=mxu_dtype, act_dtype=act_dtype)
    out_t = pl.pallas_call(
        kernel,
        out_shape=jax.ShapeDtypeStruct((OUT_PAD, N_pad), jnp.float32),
        grid_spec=grid_spec,
        compiler_params=pltpu.CompilerParams(
            dimension_semantics=("parallel",)),
    )(x_t, *kweights, *kbiases)

    if channels_first_output:
        return out_t[:OUT_DIM, :N]                              # (OUT_DIM, N)
    return out_t[:OUT_DIM, :N].T                                # (N, OUT_DIM)


# ----------------------------- parameter setup -------------------------------
def _weight_norm_effective(v):
    # nn.utils.weight_norm (dim=0): w = g * v / ||v||_row, g initialized to
    # ||v||_row -> effective weight equals v at init; applied explicitly.
    norm = jnp.sqrt(jnp.sum(v * v, axis=1, keepdims=True))
    return norm * v / jnp.maximum(norm, 1e-12)


def make_params(key):
    """Deterministic geometric init matching ImplicitNetwork.__init__ (multires=0).

    Returns (kernel_params, (torch_weights, torch_biases)).  Kernel params are
    channels-first with the skip layer's 1/sqrt(2) folded in, the two K=3
    weight blocks stacked into one (128, 3) matrix, and the ragged dims
    zero-padded (61 -> 64, 17 -> OUT_PAD=24) for aligned tiles.
    """
    layer_defs = []
    for l in range(NUM_LAYERS - 1):
        in_dim = DIMS[l]
        out_dim = DIMS[l + 1] - DIMS[0] if (l + 1) in SKIP_IN else DIMS[l + 1]
        layer_defs.append((in_dim, out_dim))

    keys = jax.random.split(key, len(layer_defs))
    weights, biases = [], []                   # PyTorch layout: W is (out, in)
    for l, (in_dim, out_dim) in enumerate(layer_defs):
        k = keys[l]
        if l == NUM_LAYERS - 2:                # last linear layer
            w = (np.sqrt(np.pi) / np.sqrt(in_dim)
                 + 0.0001 * jax.random.normal(k, (out_dim, in_dim), jnp.float32))
            b = jnp.full((out_dim,), -GEOM_BIAS, jnp.float32)
        else:
            std = np.sqrt(2.0) / np.sqrt(out_dim)
            w = std * jax.random.normal(k, (out_dim, in_dim), jnp.float32)
            b = jnp.zeros((out_dim,), jnp.float32)
        weights.append(_weight_norm_effective(w))
        biases.append(b)

    w0, w1, w2, w3, w4 = weights
    b0, b1, b2, b3, b4 = biases

    w2a = w2[:, :H_SKIP] * INV_SQRT2           # acts on h          (64, 61)
    w2b = w2[:, H_SKIP:] * INV_SQRT2           # acts on the raw x  (64, 3)

    w03 = jnp.concatenate([w0, w2b], axis=0)                  # (128, 3)
    w1p = jnp.pad(w1, ((0, H0 - H_SKIP), (0, 0)))             # (64, 64) rows 61:64 zero
    w2ap = jnp.pad(w2a, ((0, 0), (0, H0 - H_SKIP)))           # (64, 64) cols 61:64 zero
    w4p = jnp.pad(w4, ((0, OUT_PAD - OUT_DIM), (0, 0)))       # (24, 64) rows 17:24 zero

    b1p = jnp.pad(b1, (0, H0 - H_SKIP))
    b4p = jnp.pad(b4, (0, OUT_PAD - OUT_DIM))

    kweights = (w03, w1p, w2ap, w3, w4p)
    kbiases = tuple(b.reshape(-1, 1) for b in (b0, b1p, b2, b3, b4p))
    return (kweights, kbiases), (weights, biases)


# ----------------------------- pure-JAX references ---------------------------
def reference_forward(x, torch_weights, torch_biases):
    """Faithful f32 re-implementation of ImplicitNetwork.forward (multires=0)."""
    inp = x
    h = x
    n_lin = len(torch_weights)
    for l in range(n_lin):
        if l in SKIP_IN:
            h = jnp.concatenate([h, inp], axis=1) / np.sqrt(2.0)
        h = jnp.dot(h, torch_weights[l].T,
                    precision=jax.lax.Precision.HIGHEST) + torch_biases[l]
        if l < n_lin - 1:
            h = _softplus100(h)
    return h


def kernel_math_reference(x, params, mxu_dtype, act_dtype):
    """Pure-JAX mirror of the kernel's exact math (layout, casts, merged K=3 dot)."""
    kweights, kbiases = params
    w03, w1, w2a, w3, w4 = (w.astype(mxu_dtype) for w in kweights)
    b0, b1, b2, b3, b4 = (b.astype(jnp.float32) for b in kbiases)

    def lin(w, h):
        return jnp.dot(w, h.astype(mxu_dtype), preferred_element_type=jnp.float32)

    def act(pre):
        return _softplus100(pre.astype(act_dtype))

    xt = x.T.astype(mxu_dtype)
    xz = lin(w03, xt)
    h = act(xz[:H0] + b0)
    h = act(lin(w1, h) + b1)
    h = act(lin(w2a, h) + xz[H0:] + b2)
    h = act(lin(w3, h) + b3)
    out = lin(w4, h) + b4
    return out[:OUT_DIM].T


# ----------------------------- main ------------------------------------------
if __name__ == "__main__":
    key = jax.random.PRNGKey(0)
    k_param, k_x = jax.random.split(key)

    params, (tw, tb) = make_params(k_param)

    N = 600                                    # exercises multi-tile grid + padding
    x = jax.random.normal(k_x, (N, D_IN), jnp.float32)

    # Fast path: bf16 MXU operands; activation dtype chosen by generation
    # (bf16 on v6e/v7x, f32 on v5e and older).
    act_dt = default_act_dtype()
    out_fast = implicit_network_forward(x, params,
                                        mxu_dtype=jnp.bfloat16, act_dtype=act_dt)
    out_fast = jax.block_until_ready(out_fast)

    # Reference-precision path: f32 MXU operands and activations.
    out_f32 = implicit_network_forward(x, params,
                                       mxu_dtype=jnp.float32, act_dtype=jnp.float32)
    out_f32 = jax.block_until_ready(out_f32)

    # Structural check: kernel matches its own math mirror (tolerance is wider
    # when the activation chain runs in bf16).
    mirror_fast = kernel_math_reference(x, params, jnp.bfloat16, act_dt)
    tol_struct = 2e-3 if act_dt == jnp.float32 else 5e-2
    np.testing.assert_allclose(np.asarray(out_fast), np.asarray(mirror_fast),
                               rtol=tol_struct, atol=tol_struct)

    # Semantic check: f32 kernel matches the PyTorch-faithful forward pass
    # (softplus(beta=100) amplifies matmul rounding -> loose tolerance).
    ref_f32 = reference_forward(x, tw, tb)
    np.testing.assert_allclose(np.asarray(out_f32), np.asarray(ref_f32),
                               rtol=2e-2, atol=2e-2)

    assert out_fast.shape == (N, OUT_DIM)
    assert np.all(np.isfinite(np.asarray(out_fast)))
    print("KERNEL_OK")
</pallas_src>

<mosaic_0001>
module attributes {stable_mosaic.version = 11 : i64} {
  func.func @implicit_net_kernel(%arg0: i32, %arg1: memref<3x256xf32, #tpu.memory_space<vmem>>, %arg2: memref<128x3xbf16, #tpu.memory_space<vmem>>, %arg3: memref<64x64xbf16, #tpu.memory_space<vmem>>, %arg4: memref<64x64xbf16, #tpu.memory_space<vmem>>, %arg5: memref<64x64xbf16, #tpu.memory_space<vmem>>, %arg6: memref<24x64xbf16, #tpu.memory_space<vmem>>, %arg7: memref<64x1xf32, #tpu.memory_space<vmem>>, %arg8: memref<64x1xf32, #tpu.memory_space<vmem>>, %arg9: memref<64x1xf32, #tpu.memory_space<vmem>>, %arg10: memref<64x1xf32, #tpu.memory_space<vmem>>, %arg11: memref<24x1xf32, #tpu.memory_space<vmem>>, %arg12: memref<24x256xf32, #tpu.memory_space<vmem>>) attributes {dimension_semantics = [#tpu.dimension_semantics<parallel>], iteration_bounds = array<i64: 3>, scalar_prefetch = 0 : i64, scratch_operands = 0 : i64, tpu.core_type = #tpu.core_type<tc>, window_params = [{transform_indices = @transform_0, window_bounds = array<i64: 3, 256>}, {pipeline_mode = #tpu.pipeline_mode<synchronous>, transform_indices = @transform_1, window_bounds = array<i64: 128, 3>}, {pipeline_mode = #tpu.pipeline_mode<synchronous>, transform_indices = @transform_2, window_bounds = array<i64: 64, 64>}, {pipeline_mode = #tpu.pipeline_mode<synchronous>, transform_indices = @transform_3, window_bounds = array<i64: 64, 64>}, {pipeline_mode = #tpu.pipeline_mode<synchronous>, transform_indices = @transform_4, window_bounds = array<i64: 64, 64>}, {pipeline_mode = #tpu.pipeline_mode<synchronous>, transform_indices = @transform_5, window_bounds = array<i64: 24, 64>}, {pipeline_mode = #tpu.pipeline_mode<synchronous>, transform_indices = @transform_6, window_bounds = array<i64: 64, 1>}, {pipeline_mode = #tpu.pipeline_mode<synchronous>, transform_indices = @transform_7, window_bounds = array<i64: 64, 1>}, {pipeline_mode = #tpu.pipeline_mode<synchronous>, transform_indices = @transform_8, window_bounds = array<i64: 64, 1>}, {pipeline_mode = #tpu.pipeline_mode<synchronous>, transform_indices = @transform_9, window_bounds = array<i64: 64, 1>}, {pipeline_mode = #tpu.pipeline_mode<synchronous>, transform_indices = @transform_10, window_bounds = array<i64: 24, 1>}, {transform_indices = @transform_11, window_bounds = array<i64: 24, 256>}]} {
    %c0 = arith.constant 0 : index
    %c0_0 = arith.constant 0 : index
    %0 = vector.load %arg1[%c0, %c0_0] : memref<3x256xf32, #tpu.memory_space<vmem>>, vector<3x256xf32>
    %1 = arith.truncf %0 : vector<3x256xf32> to vector<3x256xbf16>
    %c0_1 = arith.constant 0 : index
    %c0_2 = arith.constant 0 : index
    %2 = vector.load %arg2[%c0_1, %c0_2] : memref<128x3xbf16, #tpu.memory_space<vmem>>, vector<128x3xbf16>
    %cst = arith.constant dense<0.000000e+00> : vector<128x256xf32>
    %3 = tpu.matmul %2, %1, %cst {dimension_numbers = #tpu.dot_dimension_numbers<[1], [0], [0], [1], [0, 0, 1, 1], [], []>} : vector<128x3xbf16>, vector<3x256xbf16>, vector<128x256xf32> -> vector<128x256xf32>
    %4 = vector.extract_strided_slice %3 {offsets = [0, 0], sizes = [64, 256], strides = [1, 1]} : vector<128x256xf32> to vector<64x256xf32>
    %c0_3 = arith.constant 0 : index
    %c0_4 = arith.constant 0 : index
    %5 = vector.load %arg7[%c0_3, %c0_4] : memref<64x1xf32, #tpu.memory_space<vmem>>, vector<64x1xf32>
    %6 = vector.broadcast %5 : vector<64x1xf32> to vector<64x256xf32>
    %7 = arith.addf %4, %6 : vector<64x256xf32>
    %8 = arith.truncf %7 : vector<64x256xf32> to vector<64x256xbf16>
    %cst_5 = arith.constant 1.000000e+02 : bf16
    %9 = vector.broadcast %cst_5 : bf16 to vector<64x256xbf16>
    %10 = arith.mulf %8, %9 : vector<64x256xbf16>
    %cst_6 = arith.constant 0.000000e+00 : bf16
    %11 = vector.broadcast %cst_6 : bf16 to vector<64x256xbf16>
    %12 = arith.maximumf %8, %11 : vector<64x256xbf16>
    %13 = math.absf %10 : vector<64x256xbf16>
    %cst_7 = arith.constant 0.000000e+00 : bf16
    %14 = vector.broadcast %cst_7 : bf16 to vector<64x256xbf16>
    %15 = arith.subf %14, %13 : vector<64x256xbf16>
    %16 = math.exp %15 : vector<64x256xbf16>
    %cst_8 = arith.constant 1.000000e+00 : bf16
    %17 = vector.broadcast %cst_8 : bf16 to vector<64x256xbf16>
    %18 = arith.addf %17, %16 : vector<64x256xbf16>
    %19 = math.log %18 : vector<64x256xbf16>
    %cst_9 = arith.constant 1.000980e-02 : bf16
    %20 = vector.broadcast %cst_9 : bf16 to vector<64x256xbf16>
    %21 = arith.mulf %19, %20 : vector<64x256xbf16>
    %22 = arith.addf %12, %21 : vector<64x256xbf16>
    %cst_10 = arith.constant 2.000000e+01 : bf16
    %23 = vector.broadcast %cst_10 : bf16 to vector<64x256xbf16>
    %24 = arith.cmpf ogt, %10, %23 : vector<64x256xbf16>
    %25 = arith.select %24, %8, %22 : vector<64x256xi1>, vector<64x256xbf16>
    %c0_11 = arith.constant 0 : index
    %c0_12 = arith.constant 0 : index
    %26 = vector.load %arg3[%c0_11, %c0_12] : memref<64x64xbf16, #tpu.memory_space<vmem>>, vector<64x64xbf16>
    %cst_13 = arith.constant dense<0.000000e+00> : vector<64x256xf32>
    %27 = tpu.matmul %26, %25, %cst_13 {dimension_numbers = #tpu.dot_dimension_numbers<[1], [0], [0], [1], [0, 0, 1, 1], [], []>} : vector<64x64xbf16>, vector<64x256xbf16>, vector<64x256xf32> -> vector<64x256xf32>
    %c0_14 = arith.constant 0 : index
    %c0_15 = arith.constant 0 : index
    %28 = vector.load %arg8[%c0_14, %c0_15] : memref<64x1xf32, #tpu.memory_space<vmem>>, vector<64x1xf32>
    %29 = vector.broadcast %28 : vector<64x1xf32> to vector<64x256xf32>
    %30 = arith.addf %27, %29 : vector<64x256xf32>
    %31 = arith.truncf %30 : vector<64x256xf32> to vector<64x256xbf16>
    %cst_16 = arith.constant 1.000000e+02 : bf16
    %32 = vector.broadcast %cst_16 : bf16 to vector<64x256xbf16>
    %33 = arith.mulf %31, %32 : vector<64x256xbf16>
    %cst_17 = arith.constant 0.000000e+00 : bf16
    %34 = vector.broadcast %cst_17 : bf16 to vector<64x256xbf16>
    %35 = arith.maximumf %31, %34 : vector<64x256xbf16>
    %36 = math.absf %33 : vector<64x256xbf16>
    %cst_18 = arith.constant 0.000000e+00 : bf16
    %37 = vector.broadcast %cst_18 : bf16 to vector<64x256xbf16>
    %38 = arith.subf %37, %36 : vector<64x256xbf16>
    %39 = math.exp %38 : vector<64x256xbf16>
    %cst_19 = arith.constant 1.000000e+00 : bf16
    %40 = vector.broadcast %cst_19 : bf16 to vector<64x256xbf16>
    %41 = arith.addf %40, %39 : vector<64x256xbf16>
    %42 = math.log %41 : vector<64x256xbf16>
    %cst_20 = arith.constant 1.000980e-02 : bf16
    %43 = vector.broadcast %cst_20 : bf16 to vector<64x256xbf16>
    %44 = arith.mulf %42, %43 : vector<64x256xbf16>
    %45 = arith.addf %35, %44 : vector<64x256xbf16>
    %cst_21 = arith.constant 2.000000e+01 : bf16
    %46 = vector.broadcast %cst_21 : bf16 to vector<64x256xbf16>
    %47 = arith.cmpf ogt, %33, %46 : vector<64x256xbf16>
    %48 = arith.select %47, %31, %45 : vector<64x256xi1>, vector<64x256xbf16>
    %c0_22 = arith.constant 0 : index
    %c0_23 = arith.constant 0 : index
    %49 = vector.load %arg4[%c0_22, %c0_23] : memref<64x64xbf16, #tpu.memory_space<vmem>>, vector<64x64xbf16>
    %cst_24 = arith.constant dense<0.000000e+00> : vector<64x256xf32>
    %50 = tpu.matmul %49, %48, %cst_24 {dimension_numbers = #tpu.dot_dimension_numbers<[1], [0], [0], [1], [0, 0, 1, 1], [], []>} : vector<64x64xbf16>, vector<64x256xbf16>, vector<64x256xf32> -> vector<64x256xf32>
    %51 = vector.extract_strided_slice %3 {offsets = [64, 0], sizes = [64, 256], strides = [1, 1]} : vector<128x256xf32> to vector<64x256xf32>
    %52 = arith.addf %50, %51 : vector<64x256xf32>
    %c0_25 = arith.constant 0 : index
    %c0_26 = arith.constant 0 : index
    %53 = vector.load %arg9[%c0_25, %c0_26] : memref<64x1xf32, #tpu.memory_space<vmem>>, vector<64x1xf32>
    %54 = vector.broadcast %53 : vector<64x1xf32> to vector<64x256xf32>
    %55 = arith.addf %52, %54 : vector<64x256xf32>
    %56 = arith.truncf %55 : vector<64x256xf32> to vector<64x256xbf16>
    %cst_27 = arith.constant 1.000000e+02 : bf16
    %57 = vector.broadcast %cst_27 : bf16 to vector<64x256xbf16>
    %58 = arith.mulf %56, %57 : vector<64x256xbf16>
    %cst_28 = arith.constant 0.000000e+00 : bf16
    %59 = vector.broadcast %cst_28 : bf16 to vector<64x256xbf16>
    %60 = arith.maximumf %56, %59 : vector<64x256xbf16>
    %61 = math.absf %58 : vector<64x256xbf16>
    %cst_29 = arith.constant 0.000000e+00 : bf16
    %62 = vector.broadcast %cst_29 : bf16 to vector<64x256xbf16>
    %63 = arith.subf %62, %61 : vector<64x256xbf16>
    %64 = math.exp %63 : vector<64x256xbf16>
    %cst_30 = arith.constant 1.000000e+00 : bf16
    %65 = vector.broadcast %cst_30 : bf16 to vector<64x256xbf16>
    %66 = arith.addf %65, %64 : vector<64x256xbf16>
    %67 = math.log %66 : vector<64x256xbf16>
    %cst_31 = arith.constant 1.000980e-02 : bf16
    %68 = vector.broadcast %cst_31 : bf16 to vector<64x256xbf16>
    %69 = arith.mulf %67, %68 : vector<64x256xbf16>
    %70 = arith.addf %60, %69 : vector<64x256xbf16>
    %cst_32 = arith.constant 2.000000e+01 : bf16
    %71 = vector.broadcast %cst_32 : bf16 to vector<64x256xbf16>
    %72 = arith.cmpf ogt, %58, %71 : vector<64x256xbf16>
    %73 = arith.select %72, %56, %70 : vector<64x256xi1>, vector<64x256xbf16>
    %c0_33 = arith.constant 0 : index
    %c0_34 = arith.constant 0 : index
    %74 = vector.load %arg5[%c0_33, %c0_34] : memref<64x64xbf16, #tpu.memory_space<vmem>>, vector<64x64xbf16>
    %cst_35 = arith.constant dense<0.000000e+00> : vector<64x256xf32>
    %75 = tpu.matmul %74, %73, %cst_35 {dimension_numbers = #tpu.dot_dimension_numbers<[1], [0], [0], [1], [0, 0, 1, 1], [], []>} : vector<64x64xbf16>, vector<64x256xbf16>, vector<64x256xf32> -> vector<64x256xf32>
    %c0_36 = arith.constant 0 : index
    %c0_37 = arith.constant 0 : index
    %76 = vector.load %arg10[%c0_36, %c0_37] : memref<64x1xf32, #tpu.memory_space<vmem>>, vector<64x1xf32>
    %77 = vector.broadcast %76 : vector<64x1xf32> to vector<64x256xf32>
    %78 = arith.addf %75, %77 : vector<64x256xf32>
    %79 = arith.truncf %78 : vector<64x256xf32> to vector<64x256xbf16>
    %cst_38 = arith.constant 1.000000e+02 : bf16
    %80 = vector.broadcast %cst_38 : bf16 to vector<64x256xbf16>
    %81 = arith.mulf %79, %80 : vector<64x256xbf16>
    %cst_39 = arith.constant 0.000000e+00 : bf16
    %82 = vector.broadcast %cst_39 : bf16 to vector<64x256xbf16>
    %83 = arith.maximumf %79, %82 : vector<64x256xbf16>
    %84 = math.absf %81 : vector<64x256xbf16>
    %cst_40 = arith.constant 0.000000e+00 : bf16
    %85 = vector.broadcast %cst_40 : bf16 to vector<64x256xbf16>
    %86 = arith.subf %85, %84 : vector<64x256xbf16>
    %87 = math.exp %86 : vector<64x256xbf16>
    %cst_41 = arith.constant 1.000000e+00 : bf16
    %88 = vector.broadcast %cst_41 : bf16 to vector<64x256xbf16>
    %89 = arith.addf %88, %87 : vector<64x256xbf16>
    %90 = math.log %89 : vector<64x256xbf16>
    %cst_42 = arith.constant 1.000980e-02 : bf16
    %91 = vector.broadcast %cst_42 : bf16 to vector<64x256xbf16>
    %92 = arith.mulf %90, %91 : vector<64x256xbf16>
    %93 = arith.addf %83, %92 : vector<64x256xbf16>
    %cst_43 = arith.constant 2.000000e+01 : bf16
    %94 = vector.broadcast %cst_43 : bf16 to vector<64x256xbf16>
    %95 = arith.cmpf ogt, %81, %94 : vector<64x256xbf16>
    %96 = arith.select %95, %79, %93 : vector<64x256xi1>, vector<64x256xbf16>
    %c0_44 = arith.constant 0 : index
    %c0_45 = arith.constant 0 : index
    %97 = vector.load %arg6[%c0_44, %c0_45] : memref<24x64xbf16, #tpu.memory_space<vmem>>, vector<24x64xbf16>
    %cst_46 = arith.constant dense<0.000000e+00> : vector<24x256xf32>
    %98 = tpu.matmul %97, %96, %cst_46 {dimension_numbers = #tpu.dot_dimension_numbers<[1], [0], [0], [1], [0, 0, 1, 1], [], []>} : vector<24x64xbf16>, vector<64x256xbf16>, vector<24x256xf32> -> vector<24x256xf32>
    %c0_47 = arith.constant 0 : index
    %c0_48 = arith.constant 0 : index
    %99 = vector.load %arg11[%c0_47, %c0_48] : memref<24x1xf32, #tpu.memory_space<vmem>>, vector<24x1xf32>
    %100 = vector.broadcast %99 : vector<24x1xf32> to vector<24x256xf32>
    %101 = arith.addf %98, %100 : vector<24x256xf32>
    %c0_49 = arith.constant 0 : index
    %c0_50 = arith.constant 0 : index
    %102 = vector.load %arg12[%c0_49, %c0_50] : memref<24x256xf32, #tpu.memory_space<vmem>>, vector<24x256xf32>
    tpu.vector_store %arg12[%c0_49, %c0_50], %101 {strides = array<i32>} : memref<24x256xf32, #tpu.memory_space<vmem>>, vector<24x256xf32>,
    return
  }
  func.func @transform_0(%arg0: i32) -> (i32, i32) {
    %c0_i32 = arith.constant 0 : i32
    %c0_i32_0 = arith.constant 0 : i32
    return %c0_i32, %arg0 : i32, i32
  }
  func.func @transform_1(%arg0: i32) -> (i32, i32) {
    %c0_i32 = arith.constant 0 : i32
    %c0_i32_0 = arith.constant 0 : i32
    %c0_i32_1 = arith.constant 0 : i32
    return %c0_i32, %c0_i32_0 : i32, i32
  }
  func.func @transform_2(%arg0: i32) -> (i32, i32) {
    %c0_i32 = arith.constant 0 : i32
    %c0_i32_0 = arith.constant 0 : i32
    %c0_i32_1 = arith.constant 0 : i32
    return %c0_i32, %c0_i32_0 : i32, i32
  }
  func.func @transform_3(%arg0: i32) -> (i32, i32) {
    %c0_i32 = arith.constant 0 : i32
    %c0_i32_0 = arith.constant 0 : i32
    %c0_i32_1 = arith.constant 0 : i32
    return %c0_i32, %c0_i32_0 : i32, i32
  }
  func.func @transform_4(%arg0: i32) -> (i32, i32) {
    %c0_i32 = arith.constant 0 : i32
    %c0_i32_0 = arith.constant 0 : i32
    %c0_i32_1 = arith.constant 0 : i32
    return %c0_i32, %c0_i32_0 : i32, i32
  }
  func.func @transform_5(%arg0: i32) -> (i32, i32) {
    %c0_i32 = arith.constant 0 : i32
    %c0_i32_0 = arith.constant 0 : i32
    %c0_i32_1 = arith.constant 0 : i32
    return %c0_i32, %c0_i32_0 : i32, i32
  }
  func.func @transform_6(%arg0: i32) -> (i32, i32) {
    %c0_i32 = arith.constant 0 : i32
    %c0_i32_0 = arith.constant 0 : i32
    %c0_i32_1 = arith.constant 0 : i32
    return %c0_i32, %c0_i32_0 : i32, i32
  }
  func.func @transform_7(%arg0: i32) -> (i32, i32) {
    %c0_i32 = arith.constant 0 : i32
    %c0_i32_0 = arith.constant 0 : i32
    %c0_i32_1 = arith.constant 0 : i32
    return %c0_i32, %c0_i32_0 : i32, i32
  }
  func.func @transform_8(%arg0: i32) -> (i32, i32) {
    %c0_i32 = arith.constant 0 : i32
    %c0_i32_0 = arith.constant 0 : i32
    %c0_i32_1 = arith.constant 0 : i32
    return %c0_i32, %c0_i32_0 : i32, i32
  }
  func.func @transform_9(%arg0: i32) -> (i32, i32) {
    %c0_i32 = arith.constant 0 : i32
    %c0_i32_0 = arith.constant 0 : i32
    %c0_i32_1 = arith.constant 0 : i32
    return %c0_i32, %c0_i32_0 : i32, i32
  }
  func.func @transform_10(%arg0: i32) -> (i32, i32) {
    %c0_i32 = arith.constant 0 : i32
    %c0_i32_0 = arith.constant 0 : i32
    %c0_i32_1 = arith.constant 0 : i32
    return %c0_i32, %c0_i32_0 : i32, i32
  }
  func.func @transform_11(%arg0: i32) -> (i32, i32) {
    %c0_i32 = arith.constant 0 : i32
    %c0_i32_0 = arith.constant 0 : i32
    return %c0_i32, %arg0 : i32, i32
  }
}

</mosaic_0001>

<llo_original>
// kernel: tpu_custom_call.1
$region0: #{tpu_custom_call.1}
  #allocation0 [shape = 'u32[]', space=smem, size = 0x4, offset = 0x4, fixed_abs, tag = 'smem constant byte address 0x4 - core index']
  #allocation1 [shape = 'u32[144,128]{1,0:T(1,128)}', space=vmem, size = 0x12000, scoped, tag = 'internal scratch']
  %s0 = inlined_call_operand.vmem [shape: f32[3,768], index: 0, kind: input, shape index: {}]
  %s1 = inlined_call_operand.vmem [shape: bf16[128,3], index: 1, kind: input, shape index: {}]
  %s2 = inlined_call_operand.vmem [shape: bf16[64,64], index: 2, kind: input, shape index: {}]
  %s3 = inlined_call_operand.vmem [shape: bf16[64,64], index: 3, kind: input, shape index: {}]
  %s4 = inlined_call_operand.vmem [shape: bf16[64,64], index: 4, kind: input, shape index: {}]
  %s5 = inlined_call_operand.vmem [shape: bf16[24,64], index: 5, kind: input, shape index: {}]
  %s6 = inlined_call_operand.vmem [shape: f32[64,1], index: 6, kind: input, shape index: {}]
  %s7 = inlined_call_operand.vmem [shape: f32[64,1], index: 7, kind: input, shape index: {}]
  %s8 = inlined_call_operand.vmem [shape: f32[64,1], index: 8, kind: input, shape index: {}]
  %s9 = inlined_call_operand.vmem [shape: f32[64,1], index: 9, kind: input, shape index: {}]
  %s10 = inlined_call_operand.vmem [shape: f32[24,1], index: 10, kind: input, shape index: {}]
  %s11 = inlined_call_operand.hbm [shape: f32[24,768], index: 11, kind: output, shape index: {}]
  %s12 = sld [smem:[#allocation0]]
  $region77: #{tpu_custom_call.1} parent=0
    _
  %s14 = ssub.s32 1, %s12
  %s15 = scalar_select 0, %s14, %s12
  $region1: #{tpu_custom_call.1} parent=0
    #allocation2 [shape = 'u8[49152]{0}', space=vmem, size = 0xc000, scoped, tag = 'output window, operand 0']
    #allocation3 [shape = 's32[2]{0}', space=sflag, size = 0x8, scoped, tag = 'scoped memory for tpu_custom_call.1']
    %16 = vsyncpa [#allocation3], 0
    %s17 = scalar_lea.sflag [#allocation3], 1
    %18 = vsyncpa %s17, 0
    loop: start=0, step=1, limit=5
    $region2: #{tpu_custom_call.1} parent=1 // loop_pre_header
      _
    $region3: #{tpu_custom_call.1} parent=1 // loop_header
      %s20 = sphi 0, %s24
      %p21 = scmp.ge.s32.totalorder %s20, 5
      %s30 = sphi 0, %s32
      %s33 = sphi 0, %s30
      %s34 = sphi 0, %s33
      %s50 = sphi 0, %s34
      %s54 = sphi 0, %s54
      %s56 = sphi 0, %s54
      %s57 = sphi 0, %s56
      %s71 = sphi 0, %s57
      %s75 = sphi 0, %s75
      %s77 = sphi 0, %s75
      %s78 = sphi 0, %s77
      %s92 = sphi 0, %s78
      %s96 = sphi 0, %s96
      %s98 = sphi 0, %s96
      %s99 = sphi 0, %s98
      %s113 = sphi 0, %s99
      %s117 = sphi 0, %s117
      %s119 = sphi 0, %s117
      %s120 = sphi 0, %s119
      %s134 = sphi 0, %s120
      %s138 = sphi 0, %s138
      %s140 = sphi 0, %s138
      %s141 = sphi 0, %s140
      %s155 = sphi 0, %s141
      %s159 = sphi 0, %s159
      %s161 = sphi 0, %s159
      %s162 = sphi 0, %s161
      %s176 = sphi 0, %s162
      %s180 = sphi 0, %s180
      %s182 = sphi 0, %s180
      %s183 = sphi 0, %s182
      %s197 = sphi 0, %s183
      %s201 = sphi 0, %s201
      %s203 = sphi 0, %s201
      %s204 = sphi 0, %s203
      %s218 = sphi 0, %s204
      %s222 = sphi 0, %s222
      %s224 = sphi 0, %s222
      %s225 = sphi 0, %s224
      %s239 = sphi 0, %s225
      %s243 = sphi 0, %s243
      %s245 = sphi 0, %s243
      %s246 = sphi 0, %s245
      %s260 = sphi 0, %s246
      %s266 = sphi 0, %s268
      %s269 = sphi 0, %s266
      %s270 = sphi 0, %s269
      %s286 = sphi 0, %s270
    $region4: #{tpu_custom_call.1} parent=1 // loop_header_branch
      %23 = sbr.rel (%p21) target = $region8
    $region5: #{tpu_custom_call.1} parent=1 // loop_body
      %s25 = ssub.s32 %s20, 1
      %s26 = ssub.s32 %s20, 2
      %s27 = sadd.s32 %s20, 1
      %s28 = ssub.s32 %s20, %s27
      %p29 = scmp.eq.s32.totalorder %s28, 0
      %s31 = sadd.s32 %s30, 1
      %s32 = scalar_select %p29, %s30, %s31
      %p35 = pneg %p29
      %p36 = scmp.eq.s32.totalorder %s20, 2
      %p37 = por %p35, %p36
      %p38 = scmp.ne.s32.totalorder %s30, %s33
      %p39 = scmp.eq.s32.totalorder %s20, 0
      %p40 = por %p38, %p39
      %p41 = scmp.ne.s32.totalorder %s30, %s33
      %p42 = scmp.eq.s32.totalorder %s25, 2
      %p43 = por %p41, %p42
      %p44 = scmp.ne.s32.totalorder %s33, %s34
      %p45 = scmp.eq.s32.totalorder %s25, 0
      %p46 = por %p44, %p45
      %p47 = scmp.ne.s32.totalorder %s33, %s34
      %p48 = scmp.eq.s32.totalorder %s26, 2
      %p49 = por %p47, %p48
      %p51 = scmp.ne.s32.totalorder %s34, %s50
      %p52 = scmp.eq.s32.totalorder %s26, 0
      %p53 = por %p51, %p52
      %s55 = sadd.s32 %s54, 1
      %p58 = scmp.eq.s32.totalorder %s20, 2
      %p59 = scmp.ne.s32.totalorder %s54, %s56
      %p60 = scmp.eq.s32.totalorder %s20, 0
      %p61 = por %p59, %p60
      %p62 = scmp.ne.s32.totalorder %s54, %s56
      %p63 = scmp.eq.s32.totalorder %s25, 2
      %p64 = por %p62, %p63
      %p65 = scmp.ne.s32.totalorder %s56, %s57
      %p66 = scmp.eq.s32.totalorder %s25, 0
      %p67 = por %p65, %p66
      %p68 = scmp.ne.s32.totalorder %s56, %s57
      %p69 = scmp.eq.s32.totalorder %s26, 2
      %p70 = por %p68, %p69
      %p72 = scmp.ne.s32.totalorder %s57, %s71
      %p73 = scmp.eq.s32.totalorder %s26, 0
      %p74 = por %p72, %p73
      %s76 = sadd.s32 %s75, 1
      %p79 = scmp.eq.s32.totalorder %s20, 2
      %p80 = scmp.ne.s32.totalorder %s75, %s77
      %p81 = scmp.eq.s32.totalorder %s20, 0
      %p82 = por %p80, %p81
      %p83 = scmp.ne.s32.totalorder %s75, %s77
      %p84 = scmp.eq.s32.totalorder %s25, 2
      %p85 = por %p83, %p84
      %p86 = scmp.ne.s32.totalorder %s77, %s78
      %p87 = scmp.eq.s32.totalorder %s25, 0
      %p88 = por %p86, %p87
      %p89 = scmp.ne.s32.totalorder %s77, %s78
      %p90 = scmp.eq.s32.totalorder %s26, 2
      %p91 = por %p89, %p90
      %p93 = scmp.ne.s32.totalorder %s78, %s92
      %p94 = scmp.eq.s32.totalorder %s26, 0
      %p95 = por %p93, %p94
      %s97 = sadd.s32 %s96, 1
      %p100 = scmp.eq.s32.totalorder %s20, 2
      %p101 = scmp.ne.s32.totalorder %s96, %s98
      %p102 = scmp.eq.s32.totalorder %s20, 0
      %p103 = por %p101, %p102
      %p104 = scmp.ne.s32.totalorder %s96, %s98
      %p105 = scmp.eq.s32.totalorder %s25, 2
      %p106 = por %p104, %p105
      %p107 = scmp.ne.s32.totalorder %s98, %s99
      %p108 = scmp.eq.s32.totalorder %s25, 0
      %p109 = por %p107, %p108
      %p110 = scmp.ne.s32.totalorder %s98, %s99
      %p111 = scmp.eq.s32.totalorder %s26, 2
      %p112 = por %p110, %p111
      %p114 = scmp.ne.s32.totalorder %s99, %s113
      %p115 = scmp.eq.s32.totalorder %s26, 0
      %p116 = por %p114, %p115
      %s118 = sadd.s32 %s117, 1
      %p121 = scmp.eq.s32.totalorder %s20, 2
      %p122 = scmp.ne.s32.totalorder %s117, %s119
      %p123 = scmp.eq.s32.totalorder %s20, 0
      %p124 = por %p122, %p123
      %p125 = scmp.ne.s32.totalorder %s117, %s119
      %p126 = scmp.eq.s32.totalorder %s25, 2
      %p127 = por %p125, %p126
      %p128 = scmp.ne.s32.totalorder %s119, %s120
      %p129 = scmp.eq.s32.totalorder %s25, 0
      %p130 = por %p128, %p129
      %p131 = scmp.ne.s32.totalorder %s119, %s120
      %p132 = scmp.eq.s32.totalorder %s26, 2
      %p133 = por %p131, %p132
      %p135 = scmp.ne.s32.totalorder %s120, %s134
      %p136 = scmp.eq.s32.totalorder %s26, 0
      %p137 = por %p135, %p136
      %s139 = sadd.s32 %s138, 1
      %p142 = scmp.eq.s32.totalorder %s20, 2
      %p143 = scmp.ne.s32.totalorder %s138, %s140
      %p144 = scmp.eq.s32.totalorder %s20, 0
      %p145 = por %p143, %p144
      %p146 = scmp.ne.s32.totalorder %s138, %s140
      %p147 = scmp.eq.s32.totalorder %s25, 2
      %p148 = por %p146, %p147
      %p149 = scmp.ne.s32.totalorder %s140, %s141
      %p150 = scmp.eq.s32.totalorder %s25, 0
      %p151 = por %p149, %p150
      %p152 = scmp.ne.s32.totalorder %s140, %s141
      %p153 = scmp.eq.s32.totalorder %s26, 2
      %p154 = por %p152, %p153
      %p156 = scmp.ne.s32.totalorder %s141, %s155
      %p157 = scmp.eq.s32.totalorder %s26, 0
      %p158 = por %p156, %p157
      %s160 = sadd.s32 %s159, 1
      %p163 = scmp.eq.s32.totalorder %s20, 2
      %p164 = scmp.ne.s32.totalorder %s159, %s161
      %p165 = scmp.eq.s32.totalorder %s20, 0
      %p166 = por %p164, %p165
      %p167 = scmp.ne.s32.totalorder %s159, %s161
      %p168 = scmp.eq.s32.totalorder %s25, 2
      %p169 = por %p167, %p168
      %p170 = scmp.ne.s32.totalorder %s161, %s162
      %p171 = scmp.eq.s32.totalorder %s25, 0
      %p172 = por %p170, %p171
      %p173 = scmp.ne.s32.totalorder %s161, %s162
      %p174 = scmp.eq.s32.totalorder %s26, 2
      %p175 = por %p173, %p174
      %p177 = scmp.ne.s32.totalorder %s162, %s176
      %p178 = scmp.eq.s32.totalorder %s26, 0
      %p179 = por %p177, %p178
      %s181 = sadd.s32 %s180, 1
      %p184 = scmp.eq.s32.totalorder %s20, 2
      %p185 = scmp.ne.s32.totalorder %s180, %s182
      %p186 = scmp.eq.s32.totalorder %s20, 0
      %p187 = por %p185, %p186
      %p188 = scmp.ne.s32.totalorder %s180, %s182
      %p189 = scmp.eq.s32.totalorder %s25, 2
      %p190 = por %p188, %p189
      %p191 = scmp.ne.s32.totalorder %s182, %s183
      %p192 = scmp.eq.s32.totalorder %s25, 0
      %p193 = por %p191, %p192
      %p194 = scmp.ne.s32.totalorder %s182, %s183
      %p195 = scmp.eq.s32.totalorder %s26, 2
      %p196 = por %p194, %p195
      %p198 = scmp.ne.s32.totalorder %s183, %s197
      %p199 = scmp.eq.s32.totalorder %s26, 0
      %p200 = por %p198, %p199
      %s202 = sadd.s32 %s201, 1
      %p205 = scmp.eq.s32.totalorder %s20, 2
      %p206 = scmp.ne.s32.totalorder %s201, %s203
      %p207 = scmp.eq.s32.totalorder %s20, 0
      %p208 = por %p206, %p207
      %p209 = scmp.ne.s32.totalorder %s201, %s203
      %p210 = scmp.eq.s32.totalorder %s25, 2
      %p211 = por %p209, %p210
      %p212 = scmp.ne.s32.totalorder %s203, %s204
      %p213 = scmp.eq.s32.totalorder %s25, 0
      %p214 = por %p212, %p213
      %p215 = scmp.ne.s32.totalorder %s203, %s204
      %p216 = scmp.eq.s32.totalorder %s26, 2
      %p217 = por %p215, %p216
      %p219 = scmp.ne.s32.totalorder %s204, %s218
      %p220 = scmp.eq.s32.totalorder %s26, 0
      %p221 = por %p219, %p220
      %s223 = sadd.s32 %s222, 1
      %p226 = scmp.eq.s32.totalorder %s20, 2
      %p227 = scmp.ne.s32.totalorder %s222, %s224
      %p228 = scmp.eq.s32.totalorder %s20, 0
      %p229 = por %p227, %p228
      %p230 = scmp.ne.s32.totalorder %s222, %s224
      %p231 = scmp.eq.s32.totalorder %s25, 2
      %p232 = por %p230, %p231
      %p233 = scmp.ne.s32.totalorder %s224, %s225
      %p234 = scmp.eq.s32.totalorder %s25, 0
      %p235 = por %p233, %p234
      %p236 = scmp.ne.s32.totalorder %s224, %s225
      %p237 = scmp.eq.s32.totalorder %s26, 2
      %p238 = por %p236, %p237
      %p240 = scmp.ne.s32.totalorder %s225, %s239
      %p241 = scmp.eq.s32.totalorder %s26, 0
      %p242 = por %p240, %p241
      %s244 = sadd.s32 %s243, 1
      %p247 = scmp.eq.s32.totalorder %s20, 2
      %p248 = scmp.ne.s32.totalorder %s243, %s245
      %p249 = scmp.eq.s32.totalorder %s20, 0
      %p250 = por %p248, %p249
      %p251 = scmp.ne.s32.totalorder %s243, %s245
      %p252 = scmp.eq.s32.totalorder %s25, 2
      %p253 = por %p251, %p252
      %p254 = scmp.ne.s32.totalorder %s245, %s246
      %p255 = scmp.eq.s32.totalorder %s25, 0
      %p256 = por %p254, %p255
      %p257 = scmp.ne.s32.totalorder %s245, %s246
      %p258 = scmp.eq.s32.totalorder %s26, 2
      %p259 = por %p257, %p258
      %p261 = scmp.ne.s32.totalorder %s246, %s260
      %p262 = scmp.eq.s32.totalorder %s26, 0
      %p263 = por %p261, %p262
      %s264 = ssub.s32 %s20, %s27
      %p265 = scmp.eq.s32.totalorder %s264, 0
      %s267 = sadd.s32 %s266, 1
      %s268 = scalar_select %p265, %s266, %s267
      %p271 = pneg %p265
      %p272 = scmp.eq.s32.totalorder %s20, 2
      %p273 = por %p271, %p272
      %p274 = scmp.ne.s32.totalorder %s266, %s269
      %p275 = scmp.eq.s32.totalorder %s20, 0
      %p276 = por %p274, %p275
      %p277 = scmp.ne.s32.totalorder %s266, %s269
      %p278 = scmp.eq.s32.totalorder %s25, 2
      %p279 = por %p277, %p278
      %p280 = scmp.ne.s32.totalorder %s269, %s270
      %p281 = scmp.eq.s32.totalorder %s25, 0
      %p282 = por %p280, %p281
      %p283 = scmp.ne.s32.totalorder %s269, %s270
      %p284 = scmp.eq.s32.totalorder %s26, 2
      %p285 = por %p283, %p284
      %p287 = scmp.ne.s32.totalorder %s270, %s286
      %p288 = scmp.eq.s32.totalorder %s26, 0
      %p289 = por %p287, %p288
      %p290 = scmp.le.s32.totalorder 1, %s20
      %p291 = scmp.lt.s32.totalorder %s20, 4
      %p292 = pnand %p290, %p291
      %p293 = pneg %p292
      // Predicated region
      $region9: #{tpu_custom_call.1} parent=5 // pred_check
        _
      $region10: #{tpu_custom_call.1} parent=5 // pred_check_branch
        %295 = sbr.rel (%p292) target = $region12
      $region11: #{tpu_custom_call.1} parent=5 // pred_region
        %s296 = ssub.s32 %s20, 1
        // Predicated region
        $region13: #{tpu_custom_call.1} parent=11 // pred_check
          %p297 = pneg %p67
        $region14: #{tpu_custom_call.1} parent=11 // pred_check_branch
          %299 = sbr.rel (%p297) target = $region16
        $region15: #{tpu_custom_call.1} parent=11 // pred_region
          _
        $region16: #{tpu_custom_call.1} parent=11 // pred_fallthru
          _
        // Predicated region
        $region17: #{tpu_custom_call.1} parent=11 // pred_check
          %p300 = pneg %p88
        $region18: #{tpu_custom_call.1} parent=11 // pred_check_branch
          %302 = sbr.rel (%p300) target = $region20
        $region19: #{tpu_custom_call.1} parent=11 // pred_region
          _
        $region20: #{tpu_custom_call.1} parent=11 // pred_fallthru
          _
        // Predicated region
        $region21: #{tpu_custom_call.1} parent=11 // pred_check
          %p303 = pneg %p109
        $region22: #{tpu_custom_call.1} parent=11 // pred_check_branch
          %305 = sbr.rel (%p303) target = $region24
        $region23: #{tpu_custom_call.1} parent=11 // pred_region
          _
        $region24: #{tpu_custom_call.1} parent=11 // pred_fallthru
          _
        // Predicated region
        $region25: #{tpu_custom_call.1} parent=11 // pred_check
          %p306 = pneg %p130
        $region26: #{tpu_custom_call.1} parent=11 // pred_check_branch
          %308 = sbr.rel (%p306) target = $region28
        $region27: #{tpu_custom_call.1} parent=11 // pred_region
          _
        $region28: #{tpu_custom_call.1} parent=11 // pred_fallthru
          _
        // Predicated region
        $region29: #{tpu_custom_call.1} parent=11 // pred_check
          %p309 = pneg %p151
        $region30: #{tpu_custom_call.1} parent=11 // pred_check_branch
          %311 = sbr.rel (%p309) target = $region32
        $region31: #{tpu_custom_call.1} parent=11 // pred_region
          _
        $region32: #{tpu_custom_call.1} parent=11 // pred_fallthru
          _
        // Predicated region
        $region33: #{tpu_custom_call.1} parent=11 // pred_check
          %p312 = pneg %p172
        $region34: #{tpu_custom_call.1} parent=11 // pred_check_branch
          %314 = sbr.rel (%p312) target = $region36
        $region35: #{tpu_custom_call.1} parent=11 // pred_region
          _
        $region36: #{tpu_custom_call.1} parent=11 // pred_fallthru
          _
        // Predicated region
        $region37: #{tpu_custom_call.1} parent=11 // pred_check
          %p315 = pneg %p193
        $region38: #{tpu_custom_call.1} parent=11 // pred_check_branch
          %317 = sbr.rel (%p315) target = $region40
        $region39: #{tpu_custom_call.1} parent=11 // pred_region
          _
        $region40: #{tpu_custom_call.1} parent=11 // pred_fallthru
          _
        // Predicated region
        $region41: #{tpu_custom_call.1} parent=11 // pred_check
          %p318 = pneg %p214
        $region42: #{tpu_custom_call.1} parent=11 // pred_check_branch
          %320 = sbr.rel (%p318) target = $region44
        $region43: #{tpu_custom_call.1} parent=11 // pred_region
          _
        $region44: #{tpu_custom_call.1} parent=11 // pred_fallthru
          _
        // Predicated region
        $region45: #{tpu_custom_call.1} parent=11 // pred_check
          %p321 = pneg %p235
        $region46: #{tpu_custom_call.1} parent=11 // pred_check_branch
          %323 = sbr.rel (%p321) target = $region48
        $region47: #{tpu_custom_call.1} parent=11 // pred_region
          _
        $region48: #{tpu_custom_call.1} parent=11 // pred_fallthru
          _
        // Predicated region
        $region49: #{tpu_custom_call.1} parent=11 // pred_check
          %p324 = pneg %p256
        $region50: #{tpu_custom_call.1} parent=11 // pred_check_branch
          %326 = sbr.rel (%p324) target = $region52
        $region51: #{tpu_custom_call.1} parent=11 // pred_region
          _
        $region52: #{tpu_custom_call.1} parent=11 // pred_fallthru
          _
      $region12: #{tpu_custom_call.1} parent=5 // pred_fallthru
        _
      %p327 = scmp.lt.s32.totalorder %s20, 3
      // Predicated region
      $region53: #{tpu_custom_call.1} parent=5 // pred_check
        %p328 = pneg %p327
      $region54: #{tpu_custom_call.1} parent=5 // pred_check_branch
        %330 = sbr.rel (%p328) target = $region56
      $region55: #{tpu_custom_call.1} parent=5 // pred_region
        // Predicated region
        $region57: #{tpu_custom_call.1} parent=55 // pred_check
          %p331 = pneg %p40
        $region58: #{tpu_custom_call.1} parent=55 // pred_check_branch
          %333 = sbr.rel (%p331) target = $region60
        $region59: #{tpu_custom_call.1} parent=55 // pred_region
          %s334 = smul.u32 2, %s20
          %p335 = scmp.lt.s32.totalorder %s334, 5
          %s336 = scalar_select %p335, %s334, 5
          %s337 = smul.addr %s336, 4
          %s338 = scalar_lea.vmem %s0, %s337
          %s339 = smul.u32 2, %s20
        $region60: #{tpu_custom_call.1} parent=55 // pred_fallthru
          _
      $region56: #{tpu_custom_call.1} parent=5 // pred_fallthru
        _
      %p340 = scmp.le.s32.totalorder 1, %s20
      %p341 = scmp.lt.s32.totalorder %s20, 4
      %p342 = pnand %p340, %p341
      %p343 = pneg %p342
      // Predicated region
      $region61: #{tpu_custom_call.1} parent=5 // pred_check
        _
      $region62: #{tpu_custom_call.1} parent=5 // pred_check_branch
        %345 = sbr.rel (%p342) target = $region64
      $region63: #{tpu_custom_call.1} parent=5 // pred_region
        %s346 = ssub.s32 %s20, 1
        %s347 = smul.u32 2, %s25
        %p348 = scmp.lt.s32.totalorder %s347, 5
        %s349 = scalar_select %p348, %s347, 5
        %s350 = smul.addr %s349, 4
        %s351 = scalar_lea.vmem %s0, %s350
        %p352 = pneg %p46
        %p353 = pneg %p43
        %p354 = pneg %p67
        %p355 = pneg %p64
        %p356 = pneg %p88
        %p357 = pneg %p85
        %p358 = pneg %p109
        %p359 = pneg %p106
        %p360 = pneg %p130
        %p361 = pneg %p127
        %p362 = pneg %p151
        %p363 = pneg %p148
        %p364 = pneg %p172
        %p365 = pneg %p169
        %p366 = pneg %p193
        %p367 = pneg %p190
        %p368 = pneg %p214
        %p369 = pneg %p211
        %p370 = pneg %p235
        %p371 = pneg %p232
        %p372 = pneg %p256
        %p373 = pneg %p253
        %p374 = pneg %p282
        %p375 = pneg %p279
        %s376 = sand.u32 %s269, 1
        %s377 = scalar_lea.sflag [#allocation3], %s376
        %s378 = sand.u32 %s269, 1
        %s379 = smul.addr %s378, 48
        %s380 = scalar_lea.vmem [#allocation2], %s379
        %s381 = smul.u32 2, %s25
        %p382 = scmp.lt.s32.totalorder %s381, 5
        %s383 = scalar_select %p382, %s381, 5
        %s384 = smul.addr %s383, 4
        %s385 = scalar_lea.vmem %s0, %s384
        %s386 = smul.u32 2, %s25
        %s387 = smul.u32 2, %s25
        %v393 = vld [vmem:[%s385] sm:$0x77]
        %v395 = vcombine.high %v393, %v393
        %v397 = vpack.c.bf16 %v393, %v393
        %v398 = vpack.c.bf16 %v395, %v395
        %v399 = vld [vmem:[%s1] sm:$0xf]
        %v400 = vld [vmem:[%s1 + $0x4] sm:$0xf]
        %v401 = vld [vmem:[%s1 + $0x8] sm:$0xf]
        %v402 = vld [vmem:[%s1 + $0xc] sm:$0xf]
        %v403 = vld [vmem:[%s1 + $0x10] sm:$0xf]
        %v404 = vld [vmem:[%s1 + $0x14] sm:$0xf]
        %v405 = vld [vmem:[%s1 + $0x18] sm:$0xf]
        %v406 = vld [vmem:[%s1 + $0x1c] sm:$0xf]
        %v407 = vld [vmem:[%s1 + $0x20] sm:$0xf]
        %v408 = vld [vmem:[%s1 + $0x24] sm:$0xf]
        %v409 = vld [vmem:[%s1 + $0x28] sm:$0xf]
        %v410 = vld [vmem:[%s1 + $0x2c] sm:$0xf]
        %v411 = vld [vmem:[%s1 + $0x30] sm:$0xf]
        %v412 = vld [vmem:[%s1 + $0x34] sm:$0xf]
        %v413 = vld [vmem:[%s1 + $0x38] sm:$0xf]
        %v414 = vld [vmem:[%s1 + $0x3c] sm:$0xf]
        %v431 = vunpack.c.l.b16 %v399
        %v432 = vunpack.c.l.b16 %v400
        %v433 = vunpack.c.l.b16 %v401
        %v434 = vunpack.c.l.b16 %v402
        %v435 = vunpack.c.l.b16 %v403
        %v436 = vunpack.c.l.b16 %v404
        %v437 = vunpack.c.l.b16 %v405
        %v438 = vunpack.c.l.b16 %v406
        %v439 = vunpack.c.l.b16 %v407
        %v440 = vunpack.c.l.b16 %v408
        %v441 = vunpack.c.l.b16 %v409
        %v442 = vunpack.c.l.b16 %v410
        %v443 = vunpack.c.l.b16 %v411
        %v444 = vunpack.c.l.b16 %v412
        %v445 = vunpack.c.l.b16 %v413
        %v446 = vunpack.c.l.b16 %v414
        %v447 = vpack.c.b16 %v432, %v431
        %v448 = vpack.c.b16 %v434, %v433
        %v449 = vpack.c.b16 %v436, %v435
        %v450 = vpack.c.b16 %v438, %v437
        %v451 = vpack.c.b16 %v440, %v439
        %v452 = vpack.c.b16 %v442, %v441
        %v453 = vpack.c.b16 %v444, %v443
        %v454 = vpack.c.b16 %v446, %v445
        %vm455 = vcmask 23552
        %v457 = vsel %vm455, %v447, 0
        %v460 = vsel %vm455, %v448, 0
        %v463 = vsel %vm455, %v449, 0
        %v466 = vsel %vm455, %v450, 0
        %v469 = vsel %vm455, %v451, 0
        %v472 = vsel %vm455, %v452, 0
        %v475 = vsel %vm455, %v453, 0
        %v478 = vsel %vm455, %v454, 0
        %vm480 = vcmask 1040384
        %vm481 = vcmask 1041408
        %v482 = vsel %vm480, 4294967295, 65535
        %v483 = vsel %vm481, %v482, 0
        %v485 = vand.u32 %v397, %v483
        %v488 = vand.u32 %v398, %v483
        %490 = vmatprep.subr.bf16.mxu0 0
        %491 = vmatpush1.bf16.msra.mxu0 0
        %492 = vmatprep.subr.bf16.mxu0 0
        %493 = vmatpush1.bf16.msra.mxu0 0
        %494 = vmatprep.subr.bf16.mxu0 0
        %495 = vmatpush1.bf16.msra.mxu0 0
        %496 = vmatprep.subr.bf16.mxu0 0
        %497 = vmatpush1.bf16.msra.mxu0 0
        %498 = vmatprep.subr.bf16.mxu0 0
        %499 = vmatpush1.bf16.msra.mxu0 0
        %500 = vmatprep.subr.bf16.mxu0 0
        %501 = vmatpush1.bf16.msra.mxu0 0
        %502 = vmatprep.subr.bf16.mxu0 0
        %503 = vmatpush1.bf16.msra.mxu0 0
        %504 = vmatprep.subr.bf16.mxu0 %v488
        %505 = vmatpush1.bf16.msra.mxu0 %v485
        %506 = vmatprep.subr.bf16.mxu0 0
        %507 = vmatpush2.bf16.msra.mxu0 0
        %508 = vmatprep.subr.bf16.mxu0 0
        %509 = vmatpush2.bf16.msra.mxu0 0
        %510 = vmatprep.subr.bf16.mxu0 0
        %511 = vmatpush2.bf16.msra.mxu0 0
        %512 = vmatprep.subr.bf16.mxu0 0
        %513 = vmatpush2.bf16.msra.mxu0 0
        %514 = vmatprep.subr.bf16.mxu0 0
        %515 = vmatpush2.bf16.msra.mxu0 0
        %516 = vmatprep.subr.bf16.mxu0 0
        %517 = vmatpush2.bf16.msra.mxu0 0
        %518 = vmatprep.subr.bf16.mxu0 0
        %519 = vmatpush2.bf16.msra.mxu0 0
        %520 = vmatprep.subr.bf16.mxu0 0
        %521 = vmatpush2.bf16.msra.mxu0 0
        %522 = vmatprep.mubr.bf16.mxu0 0
        %523 = vmatmul.mubr.bf16.gmra.mxu0 %v457
        %v524 = vpop.f32.mrf.mxu0
        %v525 = vadd.f32 0.0, %v524
        %v526 = vpop.f32.mrf.mxu0
        %v527 = vadd.f32 0.0, %v526
        %v528 = vpop.f32.mrf.mxu0
        %v529 = vadd.f32 0.0, %v528
        %v530 = vpop.f32.mrf.mxu0
        %v531 = vadd.f32 0.0, %v530
        %532 = vmatprep.mubr.bf16.mxu0 0
        %533 = vmatmul.mubr.bf16.gmra.mxu0 %v460
        %v534 = vpop.f32.mrf.mxu0
        %v535 = vadd.f32 0.0, %v534
        %v536 = vpop.f32.mrf.mxu0
        %v537 = vadd.f32 0.0, %v536
        %v538 = vpop.f32.mrf.mxu0
        %v539 = vadd.f32 0.0, %v538
        %v540 = vpop.f32.mrf.mxu0
        %v541 = vadd.f32 0.0, %v540
        %542 = vmatprep.mubr.bf16.mxu0 0
        %543 = vmatmul.mubr.bf16.gmra.mxu0 %v463
        %v544 = vpop.f32.mrf.mxu0
        %v545 = vadd.f32 0.0, %v544
        %v546 = vpop.f32.mrf.mxu0
        %v547 = vadd.f32 0.0, %v546
        %v548 = vpop.f32.mrf.mxu0
        %v549 = vadd.f32 0.0, %v548
        %v550 = vpop.f32.mrf.mxu0
        %v551 = vadd.f32 0.0, %v550
        %552 = vmatprep.mubr.bf16.mxu0 0
        %553 = vmatmul.mubr.bf16.gmra.mxu0 %v466
        %v554 = vpop.f32.mrf.mxu0
        %v555 = vadd.f32 0.0, %v554
        %v556 = vpop.f32.mrf.mxu0
        %v557 = vadd.f32 0.0, %v556
        %v558 = vpop.f32.mrf.mxu0
        %v559 = vadd.f32 0.0, %v558
        %v560 = vpop.f32.mrf.mxu0
        %v561 = vadd.f32 0.0, %v560
        %562 = vmatprep.mubr.bf16.mxu0 0
        %563 = vmatmul.mubr.bf16.gmra.mxu0 %v469
        %v564 = vpop.f32.mrf.mxu0
        %v565 = vadd.f32 0.0, %v564
        %v566 = vpop.f32.mrf.mxu0
        %v567 = vadd.f32 0.0, %v566
        %v568 = vpop.f32.mrf.mxu0
        %v569 = vadd.f32 0.0, %v568
        %v570 = vpop.f32.mrf.mxu0
        %v571 = vadd.f32 0.0, %v570
        %572 = vmatprep.mubr.bf16.mxu0 0
        %573 = vmatmul.mubr.bf16.gmra.mxu0 %v472
        %v574 = vpop.f32.mrf.mxu0
        %v575 = vadd.f32 0.0, %v574
        %v576 = vpop.f32.mrf.mxu0
        %v577 = vadd.f32 0.0, %v576
        %v578 = vpop.f32.mrf.mxu0
        %v579 = vadd.f32 0.0, %v578
        %v580 = vpop.f32.mrf.mxu0
        %v581 = vadd.f32 0.0, %v580
        %582 = vmatprep.mubr.bf16.mxu0 0
        %583 = vmatmul.mubr.bf16.gmra.mxu0 %v475
        %v584 = vpop.f32.mrf.mxu0
        %v585 = vadd.f32 0.0, %v584
        %v586 = vpop.f32.mrf.mxu0
        %v587 = vadd.f32 0.0, %v586
        %v588 = vpop.f32.mrf.mxu0
        %v589 = vadd.f32 0.0, %v588
        %v590 = vpop.f32.mrf.mxu0
        %v591 = vadd.f32 0.0, %v590
        %592 = vmatprep.mubr.bf16.mxu0 0
        %593 = vmatmul.mubr.bf16.gmra.mxu0 %v478
        %v594 = vpop.f32.mrf.mxu0
        %v595 = vadd.f32 0.0, %v594
        %v596 = vpop.f32.mrf.mxu0
        %v597 = vadd.f32 0.0, %v596
        %v598 = vpop.f32.mrf.mxu0
        %v599 = vadd.f32 0.0, %v598
        %v600 = vpop.f32.mrf.mxu0
        %v601 = vadd.f32 0.0, %v600
        %602 = vdwg.mxu0
        %v603 = vld [vmem:[%s6] sm:$0xff]
        %v604 = vld [vmem:[%s6 + $0x8] sm:$0xff]
        %v605 = vld [vmem:[%s6 + $0x10] sm:$0xff]
        %v606 = vld [vmem:[%s6 + $0x18] sm:$0xff]
        %v607 = vld [vmem:[%s6 + $0x20] sm:$0xff]
        %v608 = vld [vmem:[%s6 + $0x28] sm:$0xff]
        %v609 = vld [vmem:[%s6 + $0x30] sm:$0xff]
        %v610 = vld [vmem:[%s6 + $0x38] sm:$0xff]
        %612 = vset.pattern.permute.xlu0 0
        %613 = vperm.xlu0 %612, %v603
        %v614 = vpop.permute.xlu0 %613
        %617 = vset.pattern.permute.xlu0 0
        %618 = vperm.xlu0 %617, %v604
        %v619 = vpop.permute.xlu0 %618
        %622 = vset.pattern.permute.xlu0 0
        %623 = vperm.xlu0 %622, %v605
        %v624 = vpop.permute.xlu0 %623
        %627 = vset.pattern.permute.xlu0 0
        %628 = vperm.xlu0 %627, %v606
        %v629 = vpop.permute.xlu0 %628
        %632 = vset.pattern.permute.xlu0 0
        %633 = vperm.xlu0 %632, %v607
        %v634 = vpop.permute.xlu0 %633
        %637 = vset.pattern.permute.xlu0 0
        %638 = vperm.xlu0 %637, %v608
        %v639 = vpop.permute.xlu0 %638
        %642 = vset.pattern.permute.xlu0 0
        %643 = vperm.xlu0 %642, %v609
        %v644 = vpop.permute.xlu0 %643
        %647 = vset.pattern.permute.xlu0 0
        %648 = vperm.xlu0 %647, %v610
        %v649 = vpop.permute.xlu0 %648
        %v651 = vadd.f32 %v525, %v614
        %v652 = vadd.f32 %v527, %v614
        %v653 = vadd.f32 %v529, %v619
        %v654 = vadd.f32 %v531, %v619
        %v655 = vadd.f32 %v535, %v624
        %v656 = vadd.f32 %v537, %v624
        %v657 = vadd.f32 %v539, %v629
        %v658 = vadd.f32 %v541, %v629
        %v659 = vadd.f32 %v545, %v634
        %v660 = vadd.f32 %v547, %v634
        %v661 = vadd.f32 %v549, %v639
        %v662 = vadd.f32 %v551, %v639
        %v663 = vadd.f32 %v555, %v644
        %v664 = vadd.f32 %v557, %v644
        %v665 = vadd.f32 %v559, %v649
        %v666 = vadd.f32 %v561, %v649
        %v667 = vpack.c.bf16 %v653, %v651
        %v668 = vpack.c.bf16 %v654, %v652
        %v669 = vpack.c.bf16 %v657, %v655
        %v670 = vpack.c.bf16 %v658, %v656
        %v671 = vpack.c.bf16 %v661, %v659
        %v672 = vpack.c.bf16 %v662, %v660
        %v673 = vpack.c.bf16 %v665, %v663
        %v674 = vpack.c.bf16 %v666, %v664
        %v675 = vmul.bf16 %v667, 1120420552
        %v676 = vmul.bf16 %v668, 1120420552
        %v677 = vmul.bf16 %v669, 1120420552
        %v678 = vmul.bf16 %v670, 1120420552
        %v679 = vmul.bf16 %v671, 1120420552
        %v680 = vmul.bf16 %v672, 1120420552
        %v681 = vmul.bf16 %v673, 1120420552
        %v682 = vmul.bf16 %v674, 1120420552
        %v683 = vmax.bf16 %v667, 0
        %v684 = vmax.bf16 %v668, 0
        %v685 = vmax.bf16 %v669, 0
        %v686 = vmax.bf16 %v670, 0
        %v687 = vmax.bf16 %v671, 0
        %v688 = vmax.bf16 %v672, 0
        %v689 = vmax.bf16 %v673, 0
        %v690 = vmax.bf16 %v674, 0
        %v691 = vand.u32 2147450879, %v675
        %v692 = vand.u32 2147450879, %v676
        %v693 = vand.u32 2147450879, %v677
        %v694 = vand.u32 2147450879, %v678
        %v695 = vand.u32 2147450879, %v679
        %v696 = vand.u32 2147450879, %v680
        %v697 = vand.u32 2147450879, %v681
        %v698 = vand.u32 2147450879, %v682
        %v699 = vsub.bf16 0, %v691
        %v700 = vsub.bf16 0, %v692
        %v701 = vsub.bf16 0, %v693
        %v702 = vsub.bf16 0, %v694
        %v703 = vsub.bf16 0, %v695
        %v704 = vsub.bf16 0, %v696
        %v705 = vsub.bf16 0, %v697
        %v706 = vsub.bf16 0, %v698
        %v708 = vmul.bf16 %v699, 1069105081
        %v709 = vpow.bf16.pop %v708
        %v711 = vmul.bf16 %v700, 1069105081
        %v712 = vpow.bf16.pop %v711
        %v714 = vmul.bf16 %v701, 1069105081
        %v715 = vpow.bf16.pop %v714
        %v717 = vmul.bf16 %v702, 1069105081
        %v718 = vpow.bf16.pop %v717
        %v720 = vmul.bf16 %v703, 1069105081
        %v721 = vpow.bf16.pop %v720
        %v723 = vmul.bf16 %v704, 1069105081
        %v724 = vpow.bf16.pop %v723
        %v726 = vmul.bf16 %v705, 1069105081
        %v727 = vpow.bf16.pop %v726
        %v729 = vmul.bf16 %v706, 1069105081
        %v730 = vpow.bf16.pop %v729
        %v731 = vadd.bf16 %v709, 1065369472
        %v732 = vadd.bf16 %v712, 1065369472
        %v733 = vadd.bf16 %v715, 1065369472
        %v734 = vadd.bf16 %v718, 1065369472
        %v735 = vadd.bf16 %v721, 1065369472
        %v736 = vadd.bf16 %v724, 1065369472
        %v737 = vadd.bf16 %v727, 1065369472
        %v738 = vadd.bf16 %v730, 1065369472
        %v739 = vlog2.bf16.pop %v731
        %v741 = vmul.bf16 %v739, 1060192049
        %v742 = vlog2.bf16.pop %v732
        %v744 = vmul.bf16 %v742, 1060192049
        %v745 = vlog2.bf16.pop %v733
        %v747 = vmul.bf16 %v745, 1060192049
        %v748 = vlog2.bf16.pop %v734
        %v750 = vmul.bf16 %v748, 1060192049
        %v751 = vlog2.bf16.pop %v735
        %v753 = vmul.bf16 %v751, 1060192049
        %v754 = vlog2.bf16.pop %v736
        %v756 = vmul.bf16 %v754, 1060192049
        %v757 = vlog2.bf16.pop %v737
        %v759 = vmul.bf16 %v757, 1060192049
        %v760 = vlog2.bf16.pop %v738
        %v762 = vmul.bf16 %v760, 1060192049
        %v763 = vmul.bf16 %v741, 1009007652
        %v764 = vmul.bf16 %v744, 1009007652
        %v765 = vmul.bf16 %v747, 1009007652
        %v766 = vmul.bf16 %v750, 1009007652
        %v767 = vmul.bf16 %v753, 1009007652
        %v768 = vmul.bf16 %v756, 1009007652
        %v769 = vmul.bf16 %v759, 1009007652
        %v770 = vmul.bf16 %v762, 1009007652
        %v771 = vadd.bf16 %v683, %v763
        %v772 = vadd.bf16 %v684, %v764
        %v773 = vadd.bf16 %v685, %v765
        %v774 = vadd.bf16 %v686, %v766
        %v775 = vadd.bf16 %v687, %v767
        %v776 = vadd.bf16 %v688, %v768
        %v777 = vadd.bf16 %v689, %v769
        %v778 = vadd.bf16 %v690, %v770
        %vm779 = vcmp.gt.bf16.partialorder %v675, 1101021600
        %vm780 = vcmp.gt.bf16.partialorder %v676, 1101021600
        %vm781 = vcmp.gt.bf16.partialorder %v677, 1101021600
        %vm782 = vcmp.gt.bf16.partialorder %v678, 1101021600
        %vm783 = vcmp.gt.bf16.partialorder %v679, 1101021600
        %vm784 = vcmp.gt.bf16.partialorder %v680, 1101021600
        %vm785 = vcmp.gt.bf16.partialorder %v681, 1101021600
        %vm786 = vcmp.gt.bf16.partialorder %v682, 1101021600
        %v787 = vsel %vm779, %v667, %v771
        %v788 = vsel %vm780, %v668, %v772
        %v789 = vsel %vm781, %v669, %v773
        %v790 = vsel %vm782, %v670, %v774
        %v791 = vsel %vm783, %v671, %v775
        %v792 = vsel %vm784, %v672, %v776
        %v793 = vsel %vm785, %v673, %v777
        %v794 = vsel %vm786, %v674, %v778
        %v795 = vld [vmem:[%s2] sm:$0xf]
        %v796 = vld [vmem:[%s2 + $0x4] sm:$0xf]
        %v797 = vld [vmem:[%s2 + $0x8] sm:$0xf]
        %v798 = vld [vmem:[%s2 + $0xc] sm:$0xf]
        %v799 = vld [vmem:[%s2 + $0x10] sm:$0xf]
        %v800 = vld [vmem:[%s2 + $0x14] sm:$0xf]
        %v801 = vld [vmem:[%s2 + $0x18] sm:$0xf]
        %v802 = vld [vmem:[%s2 + $0x1c] sm:$0xf]
        %v803 = vld [vmem:[%s7] sm:$0xff]
        %v804 = vld [vmem:[%s7 + $0x8] sm:$0xff]
        %v805 = vld [vmem:[%s7 + $0x10] sm:$0xff]
        %v806 = vld [vmem:[%s7 + $0x18] sm:$0xff]
        %v807 = vld [vmem:[%s7 + $0x20] sm:$0xff]
        %v808 = vld [vmem:[%s7 + $0x28] sm:$0xff]
        %v809 = vld [vmem:[%s7 + $0x30] sm:$0xff]
        %v810 = vld [vmem:[%s7 + $0x38] sm:$0xff]
        %812 = vset.pattern.permute.xlu0 0
        %813 = vperm.xlu0 %812, %v803
        %v814 = vpop.permute.xlu0 %813
        %817 = vset.pattern.permute.xlu0 0
        %818 = vperm.xlu0 %817, %v804
        %v819 = vpop.permute.xlu0 %818
        %822 = vset.pattern.permute.xlu0 0
        %823 = vperm.xlu0 %822, %v805
        %v824 = vpop.permute.xlu0 %823
        %827 = vset.pattern.permute.xlu0 0
        %828 = vperm.xlu0 %827, %v806
        %v829 = vpop.permute.xlu0 %828
        %832 = vset.pattern.permute.xlu0 0
        %833 = vperm.xlu0 %832, %v807
        %v834 = vpop.permute.xlu0 %833
        %837 = vset.pattern.permute.xlu0 0
        %838 = vperm.xlu0 %837, %v808
        %v839 = vpop.permute.xlu0 %838
        %842 = vset.pattern.permute.xlu0 0
        %843 = vperm.xlu0 %842, %v809
        %v844 = vpop.permute.xlu0 %843
        %847 = vset.pattern.permute.xlu0 0
        %848 = vperm.xlu0 %847, %v810
        %v849 = vpop.permute.xlu0 %848
        %v859 = vunpack.c.l.b16 %v795
        %v860 = vunpack.c.l.b16 %v796
        %v861 = vunpack.c.l.b16 %v797
        %v862 = vunpack.c.l.b16 %v798
        %v863 = vunpack.c.l.b16 %v799
        %v864 = vunpack.c.l.b16 %v800
        %v865 = vunpack.c.l.b16 %v801
        %v866 = vunpack.c.l.b16 %v802
        %v867 = vpack.c.b16 %v860, %v859
        %v868 = vpack.c.b16 %v862, %v861
        %v869 = vpack.c.b16 %v864, %v863
        %v870 = vpack.c.b16 %v866, %v865
        %vm871 = vcmask 523264
        %v873 = vsel %vm871, %v867, 0
        %v876 = vsel %vm871, %v868, 0
        %v879 = vsel %vm871, %v869, 0
        %v882 = vsel %vm871, %v870, 0
        %884 = vmatprep.subr.bf16.mxu0 0
        %885 = vmatpush1.bf16.msra.mxu0 0
        %886 = vmatprep.subr.bf16.mxu0 0
        %887 = vmatpush1.bf16.msra.mxu0 0
        %888 = vmatprep.subr.bf16.mxu0 0
        %889 = vmatpush1.bf16.msra.mxu0 0
        %890 = vmatprep.subr.bf16.mxu0 0
        %891 = vmatpush1.bf16.msra.mxu0 0
        %892 = vmatprep.subr.bf16.mxu0 %v794
        %893 = vmatpush1.bf16.msra.mxu0 %v793
        %894 = vmatprep.subr.bf16.mxu0 %v792
        %895 = vmatpush1.bf16.msra.mxu0 %v791
        %896 = vmatprep.subr.bf16.mxu0 %v790
        %897 = vmatpush1.bf16.msra.mxu0 %v789
        %898 = vmatprep.subr.bf16.mxu0 %v788
        %899 = vmatpush1.bf16.msra.mxu0 %v787
        %900 = vmatprep.subr.bf16.mxu0 0
        %901 = vmatpush2.bf16.msra.mxu0 0
        %902 = vmatprep.subr.bf16.mxu0 0
        %903 = vmatpush2.bf16.msra.mxu0 0
        %904 = vmatprep.subr.bf16.mxu0 0
        %905 = vmatpush2.bf16.msra.mxu0 0
        %906 = vmatprep.subr.bf16.mxu0 0
        %907 = vmatpush2.bf16.msra.mxu0 0
        %908 = vmatprep.subr.bf16.mxu0 0
        %909 = vmatpush2.bf16.msra.mxu0 0
        %910 = vmatprep.subr.bf16.mxu0 0
        %911 = vmatpush2.bf16.msra.mxu0 0
        %912 = vmatprep.subr.bf16.mxu0 0
        %913 = vmatpush2.bf16.msra.mxu0 0
        %914 = vmatprep.subr.bf16.mxu0 0
        %915 = vmatpush2.bf16.msra.mxu0 0
        %916 = vmatprep.mubr.bf16.mxu0 0
        %917 = vmatmul.mubr.bf16.gmra.mxu0 %v873
        %v918 = vpop.f32.mrf.mxu0
        %v919 = vadd.f32 %v814, %v918
        %v920 = vpop.f32.mrf.mxu0
        %v921 = vadd.f32 %v814, %v920
        %v922 = vpop.f32.mrf.mxu0
        %v923 = vadd.f32 %v819, %v922
        %v924 = vpop.f32.mrf.mxu0
        %v925 = vadd.f32 %v819, %v924
        %926 = vmatprep.mubr.bf16.mxu0 0
        %927 = vmatmul.mubr.bf16.gmra.mxu0 %v876
        %v928 = vpop.f32.mrf.mxu0
        %v929 = vadd.f32 %v824, %v928
        %v930 = vpop.f32.mrf.mxu0
        %v931 = vadd.f32 %v824, %v930
        %v932 = vpop.f32.mrf.mxu0
        %v933 = vadd.f32 %v829, %v932
        %v934 = vpop.f32.mrf.mxu0
        %v935 = vadd.f32 %v829, %v934
        %936 = vmatprep.mubr.bf16.mxu0 0
        %937 = vmatmul.mubr.bf16.gmra.mxu0 %v879
        %v938 = vpop.f32.mrf.mxu0
        %v939 = vadd.f32 %v834, %v938
        %v940 = vpop.f32.mrf.mxu0
        %v941 = vadd.f32 %v834, %v940
        %v942 = vpop.f32.mrf.mxu0
        %v943 = vadd.f32 %v839, %v942
        %v944 = vpop.f32.mrf.mxu0
        %v945 = vadd.f32 %v839, %v944
        %946 = vmatprep.mubr.bf16.mxu0 0
        %947 = vmatmul.mubr.bf16.gmra.mxu0 %v882
        %v948 = vpop.f32.mrf.mxu0
        %v949 = vadd.f32 %v844, %v948
        %v950 = vpop.f32.mrf.mxu0
        %v951 = vadd.f32 %v844, %v950
        %v952 = vpop.f32.mrf.mxu0
        %v953 = vadd.f32 %v849, %v952
        %v954 = vpop.f32.mrf.mxu0
        %v955 = vadd.f32 %v849, %v954
        %956 = vdwg.mxu0
        %v957 = vpack.c.bf16 %v923, %v919
        %v958 = vpack.c.bf16 %v925, %v921
        %v959 = vpack.c.bf16 %v933, %v929
        %v960 = vpack.c.bf16 %v935, %v931
        %v961 = vpack.c.bf16 %v943, %v939
        %v962 = vpack.c.bf16 %v945, %v941
        %v963 = vpack.c.bf16 %v953, %v949
        %v964 = vpack.c.bf16 %v955, %v951
        %v965 = vmul.bf16 %v957, 1120420552
        %v966 = vmul.bf16 %v958, 1120420552
        %v967 = vmul.bf16 %v959, 1120420552
        %v968 = vmul.bf16 %v960, 1120420552
        %v969 = vmul.bf16 %v961, 1120420552
        %v970 = vmul.bf16 %v962, 1120420552
        %v971 = vmul.bf16 %v963, 1120420552
        %v972 = vmul.bf16 %v964, 1120420552
        %v973 = vmax.bf16 %v957, 0
        %v974 = vmax.bf16 %v958, 0
        %v975 = vmax.bf16 %v959, 0
        %v976 = vmax.bf16 %v960, 0
        %v977 = vmax.bf16 %v961, 0
        %v978 = vmax.bf16 %v962, 0
        %v979 = vmax.bf16 %v963, 0
        %v980 = vmax.bf16 %v964, 0
        %v981 = vand.u32 2147450879, %v965
        %v982 = vand.u32 2147450879, %v966
        %v983 = vand.u32 2147450879, %v967
        %v984 = vand.u32 2147450879, %v968
        %v985 = vand.u32 2147450879, %v969
        %v986 = vand.u32 2147450879, %v970
        %v987 = vand.u32 2147450879, %v971
        %v988 = vand.u32 2147450879, %v972
        %v989 = vsub.bf16 0, %v981
        %v990 = vsub.bf16 0, %v982
        %v991 = vsub.bf16 0, %v983
        %v992 = vsub.bf16 0, %v984
        %v993 = vsub.bf16 0, %v985
        %v994 = vsub.bf16 0, %v986
        %v995 = vsub.bf16 0, %v987
        %v996 = vsub.bf16 0, %v988
        %v998 = vmul.bf16 %v989, 1069105081
        %v999 = vpow.bf16.pop %v998
        %v1001 = vmul.bf16 %v990, 1069105081
        %v1002 = vpow.bf16.pop %v1001
        %v1004 = vmul.bf16 %v991, 1069105081
        %v1005 = vpow.bf16.pop %v1004
        %v1007 = vmul.bf16 %v992, 1069105081
        %v1008 = vpow.bf16.pop %v1007
        %v1010 = vmul.bf16 %v993, 1069105081
        %v1011 = vpow.bf16.pop %v1010
        %v1013 = vmul.bf16 %v994, 1069105081
        %v1014 = vpow.bf16.pop %v1013
        %v1016 = vmul.bf16 %v995, 1069105081
        %v1017 = vpow.bf16.pop %v1016
        %v1019 = vmul.bf16 %v996, 1069105081
        %v1020 = vpow.bf16.pop %v1019
        %v1021 = vadd.bf16 %v999, 1065369472
        %v1022 = vadd.bf16 %v1002, 1065369472
        %v1023 = vadd.bf16 %v1005, 1065369472
        %v1024 = vadd.bf16 %v1008, 1065369472
        %v1025 = vadd.bf16 %v1011, 1065369472
        %v1026 = vadd.bf16 %v1014, 1065369472
        %v1027 = vadd.bf16 %v1017, 1065369472
        %v1028 = vadd.bf16 %v1020, 1065369472
        %v1029 = vlog2.bf16.pop %v1021
        %v1031 = vmul.bf16 %v1029, 1060192049
        %v1032 = vlog2.bf16.pop %v1022
        %v1034 = vmul.bf16 %v1032, 1060192049
        %v1035 = vlog2.bf16.pop %v1023
        %v1037 = vmul.bf16 %v1035, 1060192049
        %v1038 = vlog2.bf16.pop %v1024
        %v1040 = vmul.bf16 %v1038, 1060192049
        %v1041 = vlog2.bf16.pop %v1025
        %v1043 = vmul.bf16 %v1041, 1060192049
        %v1044 = vlog2.bf16.pop %v1026
        %v1046 = vmul.bf16 %v1044, 1060192049
        %v1047 = vlog2.bf16.pop %v1027
        %v1049 = vmul.bf16 %v1047, 1060192049
        %v1050 = vlog2.bf16.pop %v1028
        %v1052 = vmul.bf16 %v1050, 1060192049
        %v1053 = vmul.bf16 %v1031, 1009007652
        %v1054 = vmul.bf16 %v1034, 1009007652
        %v1055 = vmul.bf16 %v1037, 1009007652
        %v1056 = vmul.bf16 %v1040, 1009007652
        %v1057 = vmul.bf16 %v1043, 1009007652
        %v1058 = vmul.bf16 %v1046, 1009007652
        %v1059 = vmul.bf16 %v1049, 1009007652
        %v1060 = vmul.bf16 %v1052, 1009007652
        %v1061 = vadd.bf16 %v973, %v1053
        %v1062 = vadd.bf16 %v974, %v1054
        %v1063 = vadd.bf16 %v975, %v1055
        %v1064 = vadd.bf16 %v976, %v1056
        %v1065 = vadd.bf16 %v977, %v1057
        %v1066 = vadd.bf16 %v978, %v1058
        %v1067 = vadd.bf16 %v979, %v1059
        %v1068 = vadd.bf16 %v980, %v1060
        %vm1069 = vcmp.gt.bf16.partialorder %v965, 1101021600
        %vm1070 = vcmp.gt.bf16.partialorder %v966, 1101021600
        %vm1071 = vcmp.gt.bf16.partialorder %v967, 1101021600
        %vm1072 = vcmp.gt.bf16.partialorder %v968, 1101021600
        %vm1073 = vcmp.gt.bf16.partialorder %v969, 1101021600
        %vm1074 = vcmp.gt.bf16.partialorder %v970, 1101021600
        %vm1075 = vcmp.gt.bf16.partialorder %v971, 1101021600
        %vm1076 = vcmp.gt.bf16.partialorder %v972, 1101021600
        %v1077 = vsel %vm1069, %v957, %v1061
        %v1078 = vsel %vm1070, %v958, %v1062
        %v1079 = vsel %vm1071, %v959, %v1063
        %v1080 = vsel %vm1072, %v960, %v1064
        %v1081 = vsel %vm1073, %v961, %v1065
        %v1082 = vsel %vm1074, %v962, %v1066
        %v1083 = vsel %vm1075, %v963, %v1067
        %v1084 = vsel %vm1076, %v964, %v1068
        %v1085 = vld [vmem:[%s3] sm:$0xf]
        %v1086 = vld [vmem:[%s3 + $0x4] sm:$0xf]
        %v1087 = vld [vmem:[%s3 + $0x8] sm:$0xf]
        %v1088 = vld [vmem:[%s3 + $0xc] sm:$0xf]
        %v1089 = vld [vmem:[%s3 + $0x10] sm:$0xf]
        %v1090 = vld [vmem:[%s3 + $0x14] sm:$0xf]
        %v1091 = vld [vmem:[%s3 + $0x18] sm:$0xf]
        %v1092 = vld [vmem:[%s3 + $0x1c] sm:$0xf]
        %v1101 = vunpack.c.l.b16 %v1085
        %v1102 = vunpack.c.l.b16 %v1086
        %v1103 = vunpack.c.l.b16 %v1087
        %v1104 = vunpack.c.l.b16 %v1088
        %v1105 = vunpack.c.l.b16 %v1089
        %v1106 = vunpack.c.l.b16 %v1090
        %v1107 = vunpack.c.l.b16 %v1091
        %v1108 = vunpack.c.l.b16 %v1092
        %v1109 = vpack.c.b16 %v1102, %v1101
        %v1110 = vpack.c.b16 %v1104, %v1103
        %v1111 = vpack.c.b16 %v1106, %v1105
        %v1112 = vpack.c.b16 %v1108, %v1107
        %v1114 = vsel %vm871, %v1109, 0
        %v1117 = vsel %vm871, %v1110, 0
        %v1120 = vsel %vm871, %v1111, 0
        %v1123 = vsel %vm871, %v1112, 0
        %1125 = vmatprep.subr.bf16.mxu0 0
        %1126 = vmatpush1.bf16.msra.mxu0 0
        %1127 = vmatprep.subr.bf16.mxu0 0
        %1128 = vmatpush1.bf16.msra.mxu0 0
        %1129 = vmatprep.subr.bf16.mxu0 0
        %1130 = vmatpush1.bf16.msra.mxu0 0
        %1131 = vmatprep.subr.bf16.mxu0 0
        %1132 = vmatpush1.bf16.msra.mxu0 0
        %1133 = vmatprep.subr.bf16.mxu0 %v1084
        %1134 = vmatpush1.bf16.msra.mxu0 %v1083
        %1135 = vmatprep.subr.bf16.mxu0 %v1082
        %1136 = vmatpush1.bf16.msra.mxu0 %v1081
        %1137 = vmatprep.subr.bf16.mxu0 %v1080
        %1138 = vmatpush1.bf16.msra.mxu0 %v1079
        %1139 = vmatprep.subr.bf16.mxu0 %v1078
        %1140 = vmatpush1.bf16.msra.mxu0 %v1077
        %1141 = vmatprep.subr.bf16.mxu0 0
        %1142 = vmatpush2.bf16.msra.mxu0 0
        %1143 = vmatprep.subr.bf16.mxu0 0
        %1144 = vmatpush2.bf16.msra.mxu0 0
        %1145 = vmatprep.subr.bf16.mxu0 0
        %1146 = vmatpush2.bf16.msra.mxu0 0
        %1147 = vmatprep.subr.bf16.mxu0 0
        %1148 = vmatpush2.bf16.msra.mxu0 0
        %1149 = vmatprep.subr.bf16.mxu0 0
        %1150 = vmatpush2.bf16.msra.mxu0 0
        %1151 = vmatprep.subr.bf16.mxu0 0
        %1152 = vmatpush2.bf16.msra.mxu0 0
        %1153 = vmatprep.subr.bf16.mxu0 0
        %1154 = vmatpush2.bf16.msra.mxu0 0
        %1155 = vmatprep.subr.bf16.mxu0 0
        %1156 = vmatpush2.bf16.msra.mxu0 0
        %1157 = vmatprep.mubr.bf16.mxu0 0
        %1158 = vmatmul.mubr.bf16.gmra.mxu0 %v1114
        %v1159 = vpop.f32.mrf.mxu0
        %v1160 = vadd.f32 %v565, %v1159
        %v1161 = vpop.f32.mrf.mxu0
        %v1162 = vadd.f32 %v567, %v1161
        %v1163 = vpop.f32.mrf.mxu0
        %v1164 = vadd.f32 %v569, %v1163
        %v1165 = vpop.f32.mrf.mxu0
        %v1166 = vadd.f32 %v571, %v1165
        %1167 = vmatprep.mubr.bf16.mxu0 0
        %1168 = vmatmul.mubr.bf16.gmra.mxu0 %v1117
        %v1169 = vpop.f32.mrf.mxu0
        %v1170 = vadd.f32 %v575, %v1169
        %v1171 = vpop.f32.mrf.mxu0
        %v1172 = vadd.f32 %v577, %v1171
        %v1173 = vpop.f32.mrf.mxu0
        %v1174 = vadd.f32 %v579, %v1173
        %v1175 = vpop.f32.mrf.mxu0
        %v1176 = vadd.f32 %v581, %v1175
        %1177 = vmatprep.mubr.bf16.mxu0 0
        %1178 = vmatmul.mubr.bf16.gmra.mxu0 %v1120
        %v1179 = vpop.f32.mrf.mxu0
        %v1180 = vadd.f32 %v585, %v1179
        %v1181 = vpop.f32.mrf.mxu0
        %v1182 = vadd.f32 %v587, %v1181
        %v1183 = vpop.f32.mrf.mxu0
        %v1184 = vadd.f32 %v589, %v1183
        %v1185 = vpop.f32.mrf.mxu0
        %v1186 = vadd.f32 %v591, %v1185
        %1187 = vmatprep.mubr.bf16.mxu0 0
        %1188 = vmatmul.mubr.bf16.gmra.mxu0 %v1123
        %v1189 = vpop.f32.mrf.mxu0
        %v1190 = vadd.f32 %v595, %v1189
        %v1191 = vpop.f32.mrf.mxu0
        %v1192 = vadd.f32 %v597, %v1191
        %v1193 = vpop.f32.mrf.mxu0
        %v1194 = vadd.f32 %v599, %v1193
        %v1195 = vpop.f32.mrf.mxu0
        %v1196 = vadd.f32 %v601, %v1195
        %1197 = vdwg.mxu0
        %v1198 = vld [vmem:[%s8] sm:$0xff]
        %v1199 = vld [vmem:[%s8 + $0x8] sm:$0xff]
        %v1200 = vld [vmem:[%s8 + $0x10] sm:$0xff]
        %v1201 = vld [vmem:[%s8 + $0x18] sm:$0xff]
        %v1202 = vld [vmem:[%s8 + $0x20] sm:$0xff]
        %v1203 = vld [vmem:[%s8 + $0x28] sm:$0xff]
        %v1204 = vld [vmem:[%s8 + $0x30] sm:$0xff]
        %v1205 = vld [vmem:[%s8 + $0x38] sm:$0xff]
        %1207 = vset.pattern.permute.xlu0 0
        %1208 = vperm.xlu0 %1207, %v1198
        %v1209 = vpop.permute.xlu0 %1208
        %1212 = vset.pattern.permute.xlu0 0
        %1213 = vperm.xlu0 %1212, %v1199
        %v1214 = vpop.permute.xlu0 %1213
        %1217 = vset.pattern.permute.xlu0 0
        %1218 = vperm.xlu0 %1217, %v1200
        %v1219 = vpop.permute.xlu0 %1218
        %1222 = vset.pattern.permute.xlu0 0
        %1223 = vperm.xlu0 %1222, %v1201
        %v1224 = vpop.permute.xlu0 %1223
        %1227 = vset.pattern.permute.xlu0 0
        %1228 = vperm.xlu0 %1227, %v1202
        %v1229 = vpop.permute.xlu0 %1228
        %1232 = vset.pattern.permute.xlu0 0
        %1233 = vperm.xlu0 %1232, %v1203
        %v1234 = vpop.permute.xlu0 %1233
        %1237 = vset.pattern.permute.xlu0 0
        %1238 = vperm.xlu0 %1237, %v1204
        %v1239 = vpop.permute.xlu0 %1238
        %1242 = vset.pattern.permute.xlu0 0
        %1243 = vperm.xlu0 %1242, %v1205
        %v1244 = vpop.permute.xlu0 %1243
        %v1246 = vadd.f32 %v1160, %v1209
        %v1247 = vadd.f32 %v1162, %v1209
        %v1248 = vadd.f32 %v1164, %v1214
        %v1249 = vadd.f32 %v1166, %v1214
        %v1250 = vadd.f32 %v1170, %v1219
        %v1251 = vadd.f32 %v1172, %v1219
        %v1252 = vadd.f32 %v1174, %v1224
        %v1253 = vadd.f32 %v1176, %v1224
        %v1254 = vadd.f32 %v1180, %v1229
        %v1255 = vadd.f32 %v1182, %v1229
        %v1256 = vadd.f32 %v1184, %v1234
        %v1257 = vadd.f32 %v1186, %v1234
        %v1258 = vadd.f32 %v1190, %v1239
        %v1259 = vadd.f32 %v1192, %v1239
        %v1260 = vadd.f32 %v1194, %v1244
        %v1261 = vadd.f32 %v1196, %v1244
        %v1262 = vpack.c.bf16 %v1248, %v1246
        %v1263 = vpack.c.bf16 %v1249, %v1247
        %v1264 = vpack.c.bf16 %v1252, %v1250
        %v1265 = vpack.c.bf16 %v1253, %v1251
        %v1266 = vpack.c.bf16 %v1256, %v1254
        %v1267 = vpack.c.bf16 %v1257, %v1255
        %v1268 = vpack.c.bf16 %v1260, %v1258
        %v1269 = vpack.c.bf16 %v1261, %v1259
        %v1270 = vmul.bf16 %v1262, 1120420552
        %v1271 = vmul.bf16 %v1263, 1120420552
        %v1272 = vmul.bf16 %v1264, 1120420552
        %v1273 = vmul.bf16 %v1265, 1120420552
        %v1274 = vmul.bf16 %v1266, 1120420552
        %v1275 = vmul.bf16 %v1267, 1120420552
        %v1276 = vmul.bf16 %v1268, 1120420552
        %v1277 = vmul.bf16 %v1269, 1120420552
        %v1278 = vmax.bf16 %v1262, 0
        %v1279 = vmax.bf16 %v1263, 0
        %v1280 = vmax.bf16 %v1264, 0
        %v1281 = vmax.bf16 %v1265, 0
        %v1282 = vmax.bf16 %v1266, 0
        %v1283 = vmax.bf16 %v1267, 0
        %v1284 = vmax.bf16 %v1268, 0
        %v1285 = vmax.bf16 %v1269, 0
        %v1286 = vand.u32 2147450879, %v1270
        %v1287 = vand.u32 2147450879, %v1271
        %v1288 = vand.u32 2147450879, %v1272
        %v1289 = vand.u32 2147450879, %v1273
        %v1290 = vand.u32 2147450879, %v1274
        %v1291 = vand.u32 2147450879, %v1275
        %v1292 = vand.u32 2147450879, %v1276
        %v1293 = vand.u32 2147450879, %v1277
        %v1294 = vsub.bf16 0, %v1286
        %v1295 = vsub.bf16 0, %v1287
        %v1296 = vsub.bf16 0, %v1288
        %v1297 = vsub.bf16 0, %v1289
        %v1298 = vsub.bf16 0, %v1290
        %v1299 = vsub.bf16 0, %v1291
        %v1300 = vsub.bf16 0, %v1292
        %v1301 = vsub.bf16 0, %v1293
        %v1303 = vmul.bf16 %v1294, 1069105081
        %v1304 = vpow.bf16.pop %v1303
        %v1306 = vmul.bf16 %v1295, 1069105081
        %v1307 = vpow.bf16.pop %v1306
        %v1309 = vmul.bf16 %v1296, 1069105081
        %v1310 = vpow.bf16.pop %v1309
        %v1312 = vmul.bf16 %v1297, 1069105081
        %v1313 = vpow.bf16.pop %v1312
        %v1315 = vmul.bf16 %v1298, 1069105081
        %v1316 = vpow.bf16.pop %v1315
        %v1318 = vmul.bf16 %v1299, 1069105081
        %v1319 = vpow.bf16.pop %v1318
        %v1321 = vmul.bf16 %v1300, 1069105081
        %v1322 = vpow.bf16.pop %v1321
        %v1324 = vmul.bf16 %v1301, 1069105081
        %v1325 = vpow.bf16.pop %v1324
        %v1326 = vadd.bf16 %v1304, 1065369472
        %v1327 = vadd.bf16 %v1307, 1065369472
        %v1328 = vadd.bf16 %v1310, 1065369472
        %v1329 = vadd.bf16 %v1313, 1065369472
        %v1330 = vadd.bf16 %v1316, 1065369472
        %v1331 = vadd.bf16 %v1319, 1065369472
        %v1332 = vadd.bf16 %v1322, 1065369472
        %v1333 = vadd.bf16 %v1325, 1065369472
        %v1334 = vlog2.bf16.pop %v1326
        %v1336 = vmul.bf16 %v1334, 1060192049
        %v1337 = vlog2.bf16.pop %v1327
        %v1339 = vmul.bf16 %v1337, 1060192049
        %v1340 = vlog2.bf16.pop %v1328
        %v1342 = vmul.bf16 %v1340, 1060192049
        %v1343 = vlog2.bf16.pop %v1329
        %v1345 = vmul.bf16 %v1343, 1060192049
        %v1346 = vlog2.bf16.pop %v1330
        %v1348 = vmul.bf16 %v1346, 1060192049
        %v1349 = vlog2.bf16.pop %v1331
        %v1351 = vmul.bf16 %v1349, 1060192049
        %v1352 = vlog2.bf16.pop %v1332
        %v1354 = vmul.bf16 %v1352, 1060192049
        %v1355 = vlog2.bf16.pop %v1333
        %v1357 = vmul.bf16 %v1355, 1060192049
        %v1358 = vmul.bf16 %v1336, 1009007652
        %v1359 = vmul.bf16 %v1339, 1009007652
        %v1360 = vmul.bf16 %v1342, 1009007652
        %v1361 = vmul.bf16 %v1345, 1009007652
        %v1362 = vmul.bf16 %v1348, 1009007652
        %v1363 = vmul.bf16 %v1351, 1009007652
        %v1364 = vmul.bf16 %v1354, 1009007652
        %v1365 = vmul.bf16 %v1357, 1009007652
        %v1366 = vadd.bf16 %v1278, %v1358
        %v1367 = vadd.bf16 %v1279, %v1359
        %v1368 = vadd.bf16 %v1280, %v1360
        %v1369 = vadd.bf16 %v1281, %v1361
        %v1370 = vadd.bf16 %v1282, %v1362
        %v1371 = vadd.bf16 %v1283, %v1363
        %v1372 = vadd.bf16 %v1284, %v1364
        %v1373 = vadd.bf16 %v1285, %v1365
        %vm1374 = vcmp.gt.bf16.partialorder %v1270, 1101021600
        %vm1375 = vcmp.gt.bf16.partialorder %v1271, 1101021600
        %vm1376 = vcmp.gt.bf16.partialorder %v1272, 1101021600
        %vm1377 = vcmp.gt.bf16.partialorder %v1273, 1101021600
        %vm1378 = vcmp.gt.bf16.partialorder %v1274, 1101021600
        %vm1379 = vcmp.gt.bf16.partialorder %v1275, 1101021600
        %vm1380 = vcmp.gt.bf16.partialorder %v1276, 1101021600
        %vm1381 = vcmp.gt.bf16.partialorder %v1277, 1101021600
        %v1382 = vsel %vm1374, %v1262, %v1366
        %v1383 = vsel %vm1375, %v1263, %v1367
        %v1384 = vsel %vm1376, %v1264, %v1368
        %v1385 = vsel %vm1377, %v1265, %v1369
        %v1386 = vsel %vm1378, %v1266, %v1370
        %v1387 = vsel %vm1379, %v1267, %v1371
        %v1388 = vsel %vm1380, %v1268, %v1372
        %v1389 = vsel %vm1381, %v1269, %v1373
        %v1390 = vld [vmem:[%s4] sm:$0xf]
        %v1391 = vld [vmem:[%s4 + $0x4] sm:$0xf]
        %v1392 = vld [vmem:[%s4 + $0x8] sm:$0xf]
        %v1393 = vld [vmem:[%s4 + $0xc] sm:$0xf]
        %v1394 = vld [vmem:[%s4 + $0x10] sm:$0xf]
        %v1395 = vld [vmem:[%s4 + $0x14] sm:$0xf]
        %v1396 = vld [vmem:[%s4 + $0x18] sm:$0xf]
        %v1397 = vld [vmem:[%s4 + $0x1c] sm:$0xf]
        %v1398 = vld [vmem:[%s9] sm:$0xff]
        %v1399 = vld [vmem:[%s9 + $0x8] sm:$0xff]
        %v1400 = vld [vmem:[%s9 + $0x10] sm:$0xff]
        %v1401 = vld [vmem:[%s9 + $0x18] sm:$0xff]
        %v1402 = vld [vmem:[%s9 + $0x20] sm:$0xff]
        %v1403 = vld [vmem:[%s9 + $0x28] sm:$0xff]
        %v1404 = vld [vmem:[%s9 + $0x30] sm:$0xff]
        %v1405 = vld [vmem:[%s9 + $0x38] sm:$0xff]
        %1407 = vset.pattern.permute.xlu0 0
        %1408 = vperm.xlu0 %1407, %v1398
        %v1409 = vpop.permute.xlu0 %1408
        %1412 = vset.pattern.permute.xlu0 0
        %1413 = vperm.xlu0 %1412, %v1399
        %v1414 = vpop.permute.xlu0 %1413
        %1417 = vset.pattern.permute.xlu0 0
        %1418 = vperm.xlu0 %1417, %v1400
        %v1419 = vpop.permute.xlu0 %1418
        %1422 = vset.pattern.permute.xlu0 0
        %1423 = vperm.xlu0 %1422, %v1401
        %v1424 = vpop.permute.xlu0 %1423
        %1427 = vset.pattern.permute.xlu0 0
        %1428 = vperm.xlu0 %1427, %v1402
        %v1429 = vpop.permute.xlu0 %1428
        %1432 = vset.pattern.permute.xlu0 0
        %1433 = vperm.xlu0 %1432, %v1403
        %v1434 = vpop.permute.xlu0 %1433
        %1437 = vset.pattern.permute.xlu0 0
        %1438 = vperm.xlu0 %1437, %v1404
        %v1439 = vpop.permute.xlu0 %1438
        %1442 = vset.pattern.permute.xlu0 0
        %1443 = vperm.xlu0 %1442, %v1405
        %v1444 = vpop.permute.xlu0 %1443
        %v1454 = vunpack.c.l.b16 %v1390
        %v1455 = vunpack.c.l.b16 %v1391
        %v1456 = vunpack.c.l.b16 %v1392
        %v1457 = vunpack.c.l.b16 %v1393
        %v1458 = vunpack.c.l.b16 %v1394
        %v1459 = vunpack.c.l.b16 %v1395
        %v1460 = vunpack.c.l.b16 %v1396
        %v1461 = vunpack.c.l.b16 %v1397
        %v1462 = vpack.c.b16 %v1455, %v1454
        %v1463 = vpack.c.b16 %v1457, %v1456
        %v1464 = vpack.c.b16 %v1459, %v1458
        %v1465 = vpack.c.b16 %v1461, %v1460
        %v1467 = vsel %vm871, %v1462, 0
        %v1470 = vsel %vm871, %v1463, 0
        %v1473 = vsel %vm871, %v1464, 0
        %v1476 = vsel %vm871, %v1465, 0
        %1478 = vmatprep.subr.bf16.mxu0 0
        %1479 = vmatpush1.bf16.msra.mxu0 0
        %1480 = vmatprep.subr.bf16.mxu0 0
        %1481 = vmatpush1.bf16.msra.mxu0 0
        %1482 = vmatprep.subr.bf16.mxu0 0
        %1483 = vmatpush1.bf16.msra.mxu0 0
        %1484 = vmatprep.subr.bf16.mxu0 0
        %1485 = vmatpush1.bf16.msra.mxu0 0
        %1486 = vmatprep.subr.bf16.mxu0 %v1389
        %1487 = vmatpush1.bf16.msra.mxu0 %v1388
        %1488 = vmatprep.subr.bf16.mxu0 %v1387
        %1489 = vmatpush1.bf16.msra.mxu0 %v1386
        %1490 = vmatprep.subr.bf16.mxu0 %v1385
        %1491 = vmatpush1.bf16.msra.mxu0 %v1384
        %1492 = vmatprep.subr.bf16.mxu0 %v1383
        %1493 = vmatpush1.bf16.msra.mxu0 %v1382
        %1494 = vmatprep.subr.bf16.mxu0 0
        %1495 = vmatpush2.bf16.msra.mxu0 0
        %1496 = vmatprep.subr.bf16.mxu0 0
        %1497 = vmatpush2.bf16.msra.mxu0 0
        %1498 = vmatprep.subr.bf16.mxu0 0
        %1499 = vmatpush2.bf16.msra.mxu0 0
        %1500 = vmatprep.subr.bf16.mxu0 0
        %1501 = vmatpush2.bf16.msra.mxu0 0
        %1502 = vmatprep.subr.bf16.mxu0 0
        %1503 = vmatpush2.bf16.msra.mxu0 0
        %1504 = vmatprep.subr.bf16.mxu0 0
        %1505 = vmatpush2.bf16.msra.mxu0 0
        %1506 = vmatprep.subr.bf16.mxu0 0
        %1507 = vmatpush2.bf16.msra.mxu0 0
        %1508 = vmatprep.subr.bf16.mxu0 0
        %1509 = vmatpush2.bf16.msra.mxu0 0
        %1510 = vmatprep.mubr.bf16.mxu0 0
        %1511 = vmatmul.mubr.bf16.gmra.mxu0 %v1467
        %v1512 = vpop.f32.mrf.mxu0
        %v1513 = vadd.f32 %v1409, %v1512
        %v1514 = vpop.f32.mrf.mxu0
        %v1515 = vadd.f32 %v1409, %v1514
        %v1516 = vpop.f32.mrf.mxu0
        %v1517 = vadd.f32 %v1414, %v1516
        %v1518 = vpop.f32.mrf.mxu0
        %v1519 = vadd.f32 %v1414, %v1518
        %1520 = vmatprep.mubr.bf16.mxu0 0
        %1521 = vmatmul.mubr.bf16.gmra.mxu0 %v1470
        %v1522 = vpop.f32.mrf.mxu0
        %v1523 = vadd.f32 %v1419, %v1522
        %v1524 = vpop.f32.mrf.mxu0
        %v1525 = vadd.f32 %v1419, %v1524
        %v1526 = vpop.f32.mrf.mxu0
        %v1527 = vadd.f32 %v1424, %v1526
        %v1528 = vpop.f32.mrf.mxu0
        %v1529 = vadd.f32 %v1424, %v1528
        %1530 = vmatprep.mubr.bf16.mxu0 0
        %1531 = vmatmul.mubr.bf16.gmra.mxu0 %v1473
        %v1532 = vpop.f32.mrf.mxu0
        %v1533 = vadd.f32 %v1429, %v1532
        %v1534 = vpop.f32.mrf.mxu0
        %v1535 = vadd.f32 %v1429, %v1534
        %v1536 = vpop.f32.mrf.mxu0
        %v1537 = vadd.f32 %v1434, %v1536
        %v1538 = vpop.f32.mrf.mxu0
        %v1539 = vadd.f32 %v1434, %v1538
        %1540 = vmatprep.mubr.bf16.mxu0 0
        %1541 = vmatmul.mubr.bf16.gmra.mxu0 %v1476
        %v1542 = vpop.f32.mrf.mxu0
        %v1543 = vadd.f32 %v1439, %v1542
        %v1544 = vpop.f32.mrf.mxu0
        %v1545 = vadd.f32 %v1439, %v1544
        %v1546 = vpop.f32.mrf.mxu0
        %v1547 = vadd.f32 %v1444, %v1546
        %v1548 = vpop.f32.mrf.mxu0
        %v1549 = vadd.f32 %v1444, %v1548
        %1550 = vdwg.mxu0
        %v1551 = vpack.c.bf16 %v1517, %v1513
        %v1552 = vpack.c.bf16 %v1519, %v1515
        %v1553 = vpack.c.bf16 %v1527, %v1523
        %v1554 = vpack.c.bf16 %v1529, %v1525
        %v1555 = vpack.c.bf16 %v1537, %v1533
        %v1556 = vpack.c.bf16 %v1539, %v1535
        %v1557 = vpack.c.bf16 %v1547, %v1543
        %v1558 = vpack.c.bf16 %v1549, %v1545
        %v1559 = vmul.bf16 %v1551, 1120420552
        %v1560 = vmul.bf16 %v1552, 1120420552
        %v1561 = vmul.bf16 %v1553, 1120420552
        %v1562 = vmul.bf16 %v1554, 1120420552
        %v1563 = vmul.bf16 %v1555, 1120420552
        %v1564 = vmul.bf16 %v1556, 1120420552
        %v1565 = vmul.bf16 %v1557, 1120420552
        %v1566 = vmul.bf16 %v1558, 1120420552
        %v1567 = vmax.bf16 %v1551, 0
        %v1568 = vmax.bf16 %v1552, 0
        %v1569 = vmax.bf16 %v1553, 0
        %v1570 = vmax.bf16 %v1554, 0
        %v1571 = vmax.bf16 %v1555, 0
        %v1572 = vmax.bf16 %v1556, 0
        %v1573 = vmax.bf16 %v1557, 0
        %v1574 = vmax.bf16 %v1558, 0
        %v1575 = vand.u32 2147450879, %v1559
        %v1576 = vand.u32 2147450879, %v1560
        %v1577 = vand.u32 2147450879, %v1561
        %v1578 = vand.u32 2147450879, %v1562
        %v1579 = vand.u32 2147450879, %v1563
        %v1580 = vand.u32 2147450879, %v1564
        %v1581 = vand.u32 2147450879, %v1565
        %v1582 = vand.u32 2147450879, %v1566
        %v1583 = vsub.bf16 0, %v1575
        %v1584 = vsub.bf16 0, %v1576
        %v1585 = vsub.bf16 0, %v1577
        %v1586 = vsub.bf16 0, %v1578
        %v1587 = vsub.bf16 0, %v1579
        %v1588 = vsub.bf16 0, %v1580
        %v1589 = vsub.bf16 0, %v1581
        %v1590 = vsub.bf16 0, %v1582
        %v1592 = vmul.bf16 %v1583, 1069105081
        %v1593 = vpow.bf16.pop %v1592
        %v1595 = vmul.bf16 %v1584, 1069105081
        %v1596 = vpow.bf16.pop %v1595
        %v1598 = vmul.bf16 %v1585, 1069105081
        %v1599 = vpow.bf16.pop %v1598
        %v1601 = vmul.bf16 %v1586, 1069105081
        %v1602 = vpow.bf16.pop %v1601
        %v1604 = vmul.bf16 %v1587, 1069105081
        %v1605 = vpow.bf16.pop %v1604
        %v1607 = vmul.bf16 %v1588, 1069105081
        %v1608 = vpow.bf16.pop %v1607
        %v1610 = vmul.bf16 %v1589, 1069105081
        %v1611 = vpow.bf16.pop %v1610
        %v1613 = vmul.bf16 %v1590, 1069105081
        %v1614 = vpow.bf16.pop %v1613
        %v1615 = vadd.bf16 %v1593, 1065369472
        %v1616 = vadd.bf16 %v1596, 1065369472
        %v1617 = vadd.bf16 %v1599, 1065369472
        %v1618 = vadd.bf16 %v1602, 1065369472
        %v1619 = vadd.bf16 %v1605, 1065369472
        %v1620 = vadd.bf16 %v1608, 1065369472
        %v1621 = vadd.bf16 %v1611, 1065369472
        %v1622 = vadd.bf16 %v1614, 1065369472
        %v1623 = vlog2.bf16.pop %v1615
        %v1625 = vmul.bf16 %v1623, 1060192049
        %v1626 = vlog2.bf16.pop %v1616
        %v1628 = vmul.bf16 %v1626, 1060192049
        %v1629 = vlog2.bf16.pop %v1617
        %v1631 = vmul.bf16 %v1629, 1060192049
        %v1632 = vlog2.bf16.pop %v1618
        %v1634 = vmul.bf16 %v1632, 1060192049
        %v1635 = vlog2.bf16.pop %v1619
        %v1637 = vmul.bf16 %v1635, 1060192049
        %v1638 = vlog2.bf16.pop %v1620
        %v1640 = vmul.bf16 %v1638, 1060192049
        %v1641 = vlog2.bf16.pop %v1621
        %v1643 = vmul.bf16 %v1641, 1060192049
        %v1644 = vlog2.bf16.pop %v1622
        %v1646 = vmul.bf16 %v1644, 1060192049
        %v1647 = vmul.bf16 %v1625, 1009007652
        %v1648 = vmul.bf16 %v1628, 1009007652
        %v1649 = vmul.bf16 %v1631, 1009007652
        %v1650 = vmul.bf16 %v1634, 1009007652
        %v1651 = vmul.bf16 %v1637, 1009007652
        %v1652 = vmul.bf16 %v1640, 1009007652
        %v1653 = vmul.bf16 %v1643, 1009007652
        %v1654 = vmul.bf16 %v1646, 1009007652
        %v1655 = vadd.bf16 %v1567, %v1647
        %v1656 = vadd.bf16 %v1568, %v1648
        %v1657 = vadd.bf16 %v1569, %v1649
        %v1658 = vadd.bf16 %v1570, %v1650
        %v1659 = vadd.bf16 %v1571, %v1651
        %v1660 = vadd.bf16 %v1572, %v1652
        %v1661 = vadd.bf16 %v1573, %v1653
        %v1662 = vadd.bf16 %v1574, %v1654
        %vm1663 = vcmp.gt.bf16.partialorder %v1559, 1101021600
        %vm1664 = vcmp.gt.bf16.partialorder %v1560, 1101021600
        %vm1665 = vcmp.gt.bf16.partialorder %v1561, 1101021600
        %vm1666 = vcmp.gt.bf16.partialorder %v1562, 1101021600
        %vm1667 = vcmp.gt.bf16.partialorder %v1563, 1101021600
        %vm1668 = vcmp.gt.bf16.partialorder %v1564, 1101021600
        %vm1669 = vcmp.gt.bf16.partialorder %v1565, 1101021600
        %vm1670 = vcmp.gt.bf16.partialorder %v1566, 1101021600
        %v1671 = vsel %vm1663, %v1551, %v1655
        %v1672 = vsel %vm1664, %v1552, %v1656
        %v1673 = vsel %vm1665, %v1553, %v1657
        %v1674 = vsel %vm1666, %v1554, %v1658
        %v1675 = vsel %vm1667, %v1555, %v1659
        %v1676 = vsel %vm1668, %v1556, %v1660
        %v1677 = vsel %vm1669, %v1557, %v1661
        %v1678 = vsel %vm1670, %v1558, %v1662
        %v1679 = vld [vmem:[%s5] sm:$0xf]
        %v1680 = vld [vmem:[%s5 + $0x4] sm:$0xf]
        %v1681 = vld [vmem:[%s5 + $0x8] sm:$0xf]
        %v1682 = vld [vmem:[%s10] sm:$0xff]
        %v1683 = vld [vmem:[%s10 + $0x8] sm:$0xff]
        %v1684 = vld [vmem:[%s10 + $0x10] sm:$0xff]
        %1686 = vset.pattern.permute.xlu0 0
        %1687 = vperm.xlu0 %1686, %v1682
        %v1688 = vpop.permute.xlu0 %1687
        %1691 = vset.pattern.permute.xlu0 0
        %1692 = vperm.xlu0 %1691, %v1683
        %v1693 = vpop.permute.xlu0 %1692
        %1696 = vset.pattern.permute.xlu0 0
        %1697 = vperm.xlu0 %1696, %v1684
        %v1698 = vpop.permute.xlu0 %1697
        %v1703 = vunpack.c.l.b16 %v1679
        %v1704 = vunpack.c.l.b16 %v1680
        %v1705 = vunpack.c.l.b16 %v1681
        %v1706 = vpack.c.b16 %v1704, %v1703
        %v1707 = vpack.c.b16 %v1705, %v1705
        %v1709 = vsel %vm871, %v1706, 0
        %v1712 = vsel %vm871, %v1707, 0
        %1714 = vmatprep.subr.bf16.mxu0 0
        %1715 = vmatpush1.bf16.msra.mxu0 0
        %1716 = vmatprep.subr.bf16.mxu0 0
        %1717 = vmatpush1.bf16.msra.mxu0 0
        %1718 = vmatprep.subr.bf16.mxu0 0
        %1719 = vmatpush1.bf16.msra.mxu0 0
        %1720 = vmatprep.subr.bf16.mxu0 0
        %1721 = vmatpush1.bf16.msra.mxu0 0
        %1722 = vmatprep.subr.bf16.mxu0 %v1678
        %1723 = vmatpush1.bf16.msra.mxu0 %v1677
        %1724 = vmatprep.subr.bf16.mxu0 %v1676
        %1725 = vmatpush1.bf16.msra.mxu0 %v1675
        %1726 = vmatprep.subr.bf16.mxu0 %v1674
        %1727 = vmatpush1.bf16.msra.mxu0 %v1673
        %1728 = vmatprep.subr.bf16.mxu0 %v1672
        %1729 = vmatpush1.bf16.msra.mxu0 %v1671
        %1730 = vmatprep.subr.bf16.mxu0 0
        %1731 = vmatpush2.bf16.msra.mxu0 0
        %1732 = vmatprep.subr.bf16.mxu0 0
        %1733 = vmatpush2.bf16.msra.mxu0 0
        %1734 = vmatprep.subr.bf16.mxu0 0
        %1735 = vmatpush2.bf16.msra.mxu0 0
        %1736 = vmatprep.subr.bf16.mxu0 0
        %1737 = vmatpush2.bf16.msra.mxu0 0
        %1738 = vmatprep.subr.bf16.mxu0 0
        %1739 = vmatpush2.bf16.msra.mxu0 0
        %1740 = vmatprep.subr.bf16.mxu0 0
        %1741 = vmatpush2.bf16.msra.mxu0 0
        %1742 = vmatprep.subr.bf16.mxu0 0
        %1743 = vmatpush2.bf16.msra.mxu0 0
        %1744 = vmatprep.subr.bf16.mxu0 0
        %1745 = vmatpush2.bf16.msra.mxu0 0
        %1746 = vmatprep.mubr.bf16.mxu0 0
        %1747 = vmatmul.mubr.bf16.gmra.mxu0 %v1709
        %v1748 = vpop.f32.mrf.mxu0
        %v1749 = vadd.f32 %v1688, %v1748
        %v1750 = vpop.f32.mrf.mxu0
        %v1751 = vadd.f32 %v1688, %v1750
        %v1752 = vpop.f32.mrf.mxu0
        %v1753 = vadd.f32 %v1693, %v1752
        %v1754 = vpop.f32.mrf.mxu0
        %v1755 = vadd.f32 %v1693, %v1754
        %1756 = vmatprep.mubr.bf16.mxu0 0
        %1757 = vmatmul.mubr.bf16.gmra.mxu0 %v1712
        %v1758 = vpop.f32.mrf.mxu0
        %v1759 = vadd.f32 %v1698, %v1758
        %v1760 = vpop.f32.mrf.mxu0
        %v1761 = vadd.f32 %v1698, %v1760
        %v1762 = vpop.f32.mrf.mxu0
        %v1763 = vpop.f32.mrf.mxu0
        %1764 = vdwg.mxu0
        %1765 = vst [vmem:[%s380] sm:$0xff] %v1749
        %1766 = vst [vmem:[%s380 + $0x8] sm:$0xff] %v1751
        %1767 = vst [vmem:[%s380 + $0x10] sm:$0xff] %v1753
        %1768 = vst [vmem:[%s380 + $0x18] sm:$0xff] %v1755
        %1769 = vst [vmem:[%s380 + $0x20] sm:$0xff] %v1759
        %1770 = vst [vmem:[%s380 + $0x28] sm:$0xff] %v1761
        %s1771 = sand.u32 %s269, 1
        %s1772 = scalar_lea.sflag [#allocation3], %s1771
        %s1773 = sand.u32 %s269, 1
        %s1774 = smul.addr %s1773, 48
        %s1775 = scalar_lea.vmem [#allocation2], %s1774
        // Predicated region
        $region65: #{tpu_custom_call.1} parent=63 // pred_check
          %p1776 = pneg %p279
        $region66: #{tpu_custom_call.1} parent=63 // pred_check_branch
          %1778 = sbr.rel (%p1776) target = $region68
        $region67: #{tpu_custom_call.1} parent=63 // pred_region
          %s1779 = smul.u32 2, %s25
          %s1781 = ssub.s32 768, 768
          %1782 = vsyncadd %s1772, %s1781
          %s1783 = smul.addr %s1779, 128
          %s1784 = scalar_lea.hbm %s11, %s1783
          %s1785 = sshll.u32 %s1775, 4
          %s1786 = int_to_ptr.vmem [resolvable:$true] %s1785
          %1791 = dma.vmem_to_hbm [thread:$0]  %s1786, 768, %s1784, %s1772, 256, 768, 16
        $region68: #{tpu_custom_call.1} parent=63 // pred_fallthru
          _
      $region64: #{tpu_custom_call.1} parent=5 // pred_fallthru
        _
      %p1792 = scmp.le.s32.totalorder 2, %s20
      // Predicated region
      $region69: #{tpu_custom_call.1} parent=5 // pred_check
        %p1793 = pneg %p1792
      $region70: #{tpu_custom_call.1} parent=5 // pred_check_branch
        %1795 = sbr.rel (%p1793) target = $region72
      $region71: #{tpu_custom_call.1} parent=5 // pred_region
        %s1796 = ssub.s32 %s20, 2
        // Predicated region
        $region73: #{tpu_custom_call.1} parent=71 // pred_check
          %p1797 = pneg %p285
        $region74: #{tpu_custom_call.1} parent=71 // pred_check_branch
          %1799 = sbr.rel (%p1797) target = $region76
        $region75: #{tpu_custom_call.1} parent=71 // pred_region
          %s1800 = sand.u32 %s270, 1
          %s1801 = scalar_lea.sflag [#allocation3], %s1800
          %s1802 = sand.u32 %s270, 1
          %s1803 = smul.addr %s1802, 48
          %s1804 = scalar_lea.vmem [#allocation2], %s1803
          %1805 = dma.done %s1801, 768
        $region76: #{tpu_custom_call.1} parent=71 // pred_fallthru
          _
      $region72: #{tpu_custom_call.1} parent=5 // pred_fallthru
        _
    $region6: #{tpu_custom_call.1} parent=1 // loop_footer
      %s24 = sadd.s32 1, %s20
    $region7: #{tpu_custom_call.1} parent=1 // loop_footer_branch
      %19 = sbr.rel target = $region3
    $region8: #{tpu_custom_call.1} parent=1 // loop_exit
      _
    %1806 = vsyncpa [#allocation3], 1
    %s1807 = scalar_lea.sflag [#allocation3], 1
    %1808 = vsyncpa %s1807, 1

</llo_original>
